<compile_context>
chip_gen: v6e
topology: v6e:2x2x1
jax: 0.10.0
libtpu: 0.0.40
codegen_flags: <defaults>
</compile_context>

<pallas_src>
import functools
import math

import jax
import jax.numpy as jnp
from jax import lax
from jax.experimental import pallas as pl
from jax.experimental.pallas import tpu as pltpu


_LANES = 128
_N_SPLIT = 2          # leading 'parallel' grid axis for the stats pass


# -----------------------------------------------------------------------------
# Kernel A: conv-as-matmul + per-channel sum / sum-of-squares accumulation
# -----------------------------------------------------------------------------
def _conv_stats_kernel(p_ref, w_ref, y_ref, sum_ref, ssq_ref):
    step = pl.program_id(1)

    y = jnp.dot(p_ref[...], w_ref[...], preferred_element_type=jnp.float32)
    y_ref[...] = y

    @pl.when(step == 0)
    def _():
        sum_ref[...] = jnp.zeros_like(sum_ref)
        ssq_ref[...] = jnp.zeros_like(ssq_ref)

    # (1, N) tile reductions broadcast-added into the (8, N) resident block:
    # every sublane row of the block ends up holding this core's partial sum.
    sum_ref[...] += jnp.sum(y, axis=0, keepdims=True)
    ssq_ref[...] += jnp.sum(y * y, axis=0, keepdims=True)


# -----------------------------------------------------------------------------
# Kernel B: fused batchnorm (precomputed scale/shift) + ReLU, elementwise
# -----------------------------------------------------------------------------
def _bn_act_kernel(y_ref, scale_ref, shift_ref, o_ref):
    o_ref[...] = jnp.maximum(y_ref[...] * scale_ref[...] + shift_ref[...], 0.0)


# -----------------------------------------------------------------------------
# pallas_call wrappers
# -----------------------------------------------------------------------------
def _conv_matmul_with_stats(patches, wmat, tm, n_split):
    Mp, K = patches.shape
    _, N = wmat.shape
    n_steps = Mp // (tm * n_split)

    def x_map(c, s):                      # also used for the y output tiles
        return (c * n_steps + s, 0)

    def w_map(c, s):
        return (0, 0)

    def acc_map(c, s):                    # per-core resident accumulator block
        return (c, 0)

    y, psum, pssq = pl.pallas_call(
        _conv_stats_kernel,
        out_shape=(
            jax.ShapeDtypeStruct((Mp, N), jnp.float32),
            jax.ShapeDtypeStruct((n_split * 8, N), jnp.float32),
            jax.ShapeDtypeStruct((n_split * 8, N), jnp.float32),
        ),
        grid=(n_split, n_steps),
        in_specs=[
            pl.BlockSpec((tm, K), x_map),
            pl.BlockSpec((K, N), w_map),
        ],
        out_specs=(
            pl.BlockSpec((tm, N), x_map),
            pl.BlockSpec((8, N), acc_map),
            pl.BlockSpec((8, N), acc_map),
        ),
        compiler_params=pltpu.CompilerParams(
            dimension_semantics=("parallel", "arbitrary")),
    )(patches, wmat)

    # Each row of a core's (8, N) block holds the same partial sum; take row 0 of
    # every group and reduce over cores.
    return y, jnp.sum(psum[0::8, :], axis=0), jnp.sum(pssq[0::8, :], axis=0)


def _bn_act(y, scale, shift, tm):
    """y: (Mp, C) f32.  In-place lane-dense y*scale + shift, ReLU."""
    Mp, C = y.shape
    rep = _LANES // math.gcd(C, _LANES)
    if tm % rep == 0 and (tm // rep) % 8 == 0 and Mp % rep == 0:
        # Free row-major reshape to full-lane rows; channel pattern tiles exactly.
        W2, R, tbn = C * rep, Mp // rep, tm // rep
        y2 = y.reshape(R, W2)
        scale2 = jnp.tile(scale.reshape(1, C), (1, rep))
        shift2 = jnp.tile(shift.reshape(1, C), (1, rep))
    else:                                 # fallback: plain (Mp, C) tiling
        W2, R, tbn = C, Mp, tm
        y2 = y
        scale2 = scale.reshape(1, C)
        shift2 = shift.reshape(1, C)

    o2 = pl.pallas_call(
        _bn_act_kernel,
        out_shape=jax.ShapeDtypeStruct((R, W2), jnp.float32),
        grid=(R // tbn,),
        in_specs=[
            pl.BlockSpec((tbn, W2), lambda i: (i, 0)),
            pl.BlockSpec((1, W2), lambda i: (0, 0)),
            pl.BlockSpec((1, W2), lambda i: (0, 0)),
        ],
        out_specs=pl.BlockSpec((tbn, W2), lambda i: (i, 0)),
        input_output_aliases={0: 0},      # overwrite y in place
        compiler_params=pltpu.CompilerParams(
            dimension_semantics=("parallel",)),
    )(y2, scale2, shift2)
    return o2.reshape(Mp, C)


# -----------------------------------------------------------------------------
# Glue: dilation / padding / im2col (pure JAX), weight rearrangement
# -----------------------------------------------------------------------------
def _im2col(xpd, k, dila):
    # xpd: (B, C, Hp, Wp)  ->  patches (B*Ho*Wo, C*k*k)
    B, C, Hp, Wp = xpd.shape
    Ho = Hp - dila * (k - 1)
    Wo = Wp - dila * (k - 1)
    cols = []
    for kh in range(k):
        for kw in range(k):
            cols.append(xpd[:, :, kh * dila:kh * dila + Ho,
                            kw * dila:kw * dila + Wo])
    p = jnp.stack(cols, axis=0)              # (k*k, B, C, Ho, Wo)
    p = p.transpose(1, 3, 4, 2, 0)           # (B, Ho, Wo, C, k*k)
    return p.reshape(B * Ho * Wo, C * k * k), Ho, Wo


@functools.partial(jax.jit, static_argnames=("ker_sz", "stride", "pad",
                                             "out_pad", "dila", "eps", "tm"))
def deconv_bn_act_2d(x, w_t, gamma, beta, *, ker_sz, stride, pad,
                     out_pad=0, dila=1, eps=1e-8, tm=512):
    """x: (B, C_in, H, W) NCHW.  w_t: (C_in, C_out, k, k) (ConvTranspose2d layout).
    Returns (B, C_out, Ho, Wo) NCHW, float32."""
    B, C_in, H, W = x.shape
    C_out = w_t.shape[1]
    k, s = ker_sz, stride

    # zero-insertion dilation of the input by stride
    Hd, Wd = (H - 1) * s + 1, (W - 1) * s + 1
    xd = jnp.zeros((B, C_in, Hd, Wd), jnp.float32)
    xd = xd.at[:, :, ::s, ::s].set(x.astype(jnp.float32))

    # padding for the equivalent forward conv (negative padding == crop)
    plo = dila * (k - 1) - pad
    phi = dila * (k - 1) - pad + out_pad
    xpd = jnp.pad(xd, ((0, 0), (0, 0),
                       (max(plo, 0), max(phi, 0)),
                       (max(plo, 0), max(phi, 0))))
    clo, chi = max(-plo, 0), max(-phi, 0)
    xpd = xpd[:, :, clo:xpd.shape[2] - chi, clo:xpd.shape[3] - chi]

    patches, Ho, Wo = _im2col(xpd, k, dila)          # (M, K) float32
    M = B * Ho * Wo

    # ConvTranspose weight -> equivalent-conv matmul weight [K, N]
    # Wmat[(c, kh, kw), o] = w_t[c, o, k-1-kh, k-1-kw]
    wmat = w_t[:, :, ::-1, ::-1].transpose(0, 2, 3, 1).reshape(
        C_in * k * k, C_out).astype(jnp.float32)

    # ---- tiling: round tm and zero-pad M so every block is (8,128)-friendly ----
    n_split = _N_SPLIT
    tm = max(128, (tm // 128) * 128)
    tm = min(tm, max(128, -(-M // (n_split * 128)) * 128))   # shrink for tiny M
    step = n_split * tm
    Mp = -(-M // step) * step
    if Mp != M:
        patches = jnp.pad(patches, ((0, Mp - M), (0, 0)))    # zero rows: stats unaffected

    y, ysum, yssq = _conv_matmul_with_stats(patches, wmat, tm, n_split)

    # BatchNorm2d (training-mode batch statistics, biased variance) over the true M
    mean = ysum / M
    var = jnp.maximum(yssq / M - mean * mean, 0.0)
    scale = gamma.astype(jnp.float32) * lax.rsqrt(var + eps)
    shift = beta.astype(jnp.float32) - mean * scale

    o = _bn_act(y, scale, shift, tm)                         # (Mp, C_out)
    o = o[:M].reshape(B, Ho, Wo, C_out).transpose(0, 3, 1, 2)  # back to NCHW
    return o


# -----------------------------------------------------------------------------
# Pure-JAX reference (lax conv with lhs_dilation == conv transpose) for checking
# -----------------------------------------------------------------------------
def _reference(x, w_t, gamma, beta, *, ker_sz, stride, pad, out_pad, dila, eps):
    k = ker_sz
    w_conv = w_t[:, :, ::-1, ::-1].transpose(1, 0, 2, 3)   # (C_out, C_in, k, k)
    plo = dila * (k - 1) - pad
    phi = dila * (k - 1) - pad + out_pad
    y = lax.conv_general_dilated(
        x.astype(jnp.float32), w_conv.astype(jnp.float32),
        window_strides=(1, 1), padding=[(plo, phi), (plo, phi)],
        lhs_dilation=(stride, stride), rhs_dilation=(dila, dila),
        dimension_numbers=("NCHW", "OIHW", "NCHW"))
    mean = y.mean(axis=(0, 2, 3), keepdims=True)
    var = ((y - mean) ** 2).mean(axis=(0, 2, 3), keepdims=True)
    yn = (y - mean) / jnp.sqrt(var + eps)
    yn = yn * gamma.reshape(1, -1, 1, 1) + beta.reshape(1, -1, 1, 1)
    return jnp.maximum(yn, 0.0)


if __name__ == "__main__":
    # module hyper-params (small, synthetic)
    B, C_in, H, W = 2, 4, 16, 16
    C_out, ker_sz, stride, pad, out_pad, dila = 8, 3, 2, 1, 1, 1
    eps = 1e-8

    key = jax.random.PRNGKey(0)
    kx, kw = jax.random.split(key)
    x = jax.random.normal(kx, (B, C_in, H, W), jnp.float32)
    # ConvTranspose2d weight: (in_ch, out_ch/groups, kH, kW), groups=1, no bias
    w_t = jax.random.normal(kw, (C_in, C_out, ker_sz, ker_sz), jnp.float32) * 0.1
    gamma = jnp.ones((C_out,), jnp.float32)     # BatchNorm2d default init
    beta = jnp.zeros((C_out,), jnp.float32)

    out = deconv_bn_act_2d(x, w_t, gamma, beta, ker_sz=ker_sz, stride=stride,
                           pad=pad, out_pad=out_pad, dila=dila, eps=eps)
    out = jax.block_until_ready(out)

    ref = _reference(x, w_t, gamma, beta, ker_sz=ker_sz, stride=stride,
                     pad=pad, out_pad=out_pad, dila=dila, eps=eps)

    Ho = (H - 1) * stride - 2 * pad + dila * (ker_sz - 1) + out_pad + 1
    Wo = (W - 1) * stride - 2 * pad + dila * (ker_sz - 1) + out_pad + 1
    assert out.shape == (B, C_out, Ho, Wo), out.shape
    assert jnp.allclose(out, ref, rtol=1e-3, atol=1e-3), (
        float(jnp.max(jnp.abs(out - ref))))

    print("KERNEL_OK")
</pallas_src>

<mosaic_0001>
module attributes {stable_mosaic.version = 11 : i64} {
  func.func @_conv_stats_kernel(%arg0: i32, %arg1: i32, %arg2: memref<512x36xf32, #tpu.memory_space<vmem>>, %arg3: memref<36x8xf32, #tpu.memory_space<vmem>>, %arg4: memref<512x8xf32, #tpu.memory_space<vmem>>, %arg5: memref<8x8xf32, #tpu.memory_space<vmem>>, %arg6: memref<8x8xf32, #tpu.memory_space<vmem>>) attributes {dimension_semantics = [#tpu.dimension_semantics<parallel>, #tpu.dimension_semantics<arbitrary>], iteration_bounds = array<i64: 2, 2>, scalar_prefetch = 0 : i64, scratch_operands = 0 : i64, tpu.core_type = #tpu.core_type<tc>, window_params = [{transform_indices = @transform_0, window_bounds = array<i64: 512, 36>}, {pipeline_mode = #tpu.pipeline_mode<synchronous>, transform_indices = @transform_1, window_bounds = array<i64: 36, 8>}, {transform_indices = @transform_2, window_bounds = array<i64: 512, 8>}, {transform_indices = @transform_3, window_bounds = array<i64: 8, 8>}, {transform_indices = @transform_4, window_bounds = array<i64: 8, 8>}]} {
    %c0 = arith.constant 0 : index
    %c0_0 = arith.constant 0 : index
    %0 = vector.load %arg2[%c0, %c0_0] : memref<512x36xf32, #tpu.memory_space<vmem>>, vector<512x36xf32>
    %c0_1 = arith.constant 0 : index
    %c0_2 = arith.constant 0 : index
    %1 = vector.load %arg3[%c0_1, %c0_2] : memref<36x8xf32, #tpu.memory_space<vmem>>, vector<36x8xf32>
    %cst = arith.constant dense<0.000000e+00> : vector<512x8xf32>
    %2 = tpu.matmul %0, %1, %cst {dimension_numbers = #tpu.dot_dimension_numbers<[1], [0], [0], [1], [0, 0, 1, 1], [], []>} : vector<512x36xf32>, vector<36x8xf32>, vector<512x8xf32> -> vector<512x8xf32>
    %c0_3 = arith.constant 0 : index
    %c0_4 = arith.constant 0 : index
    %3 = vector.load %arg4[%c0_3, %c0_4] : memref<512x8xf32, #tpu.memory_space<vmem>>, vector<512x8xf32>
    tpu.vector_store %arg4[%c0_3, %c0_4], %2 {strides = array<i32>} : memref<512x8xf32, #tpu.memory_space<vmem>>, vector<512x8xf32>,
    %c0_i32 = arith.constant 0 : i32
    %4 = arith.cmpi eq, %arg1, %c0_i32 : i32
    %5 = arith.extui %4 : i1 to i32
    %c0_i32_5 = arith.constant 0 : i32
    %6 = arith.cmpi ne, %5, %c0_i32_5 : i32
    scf.if %6 {
      %cst_16 = arith.constant 0.000000e+00 : f32
      %20 = vector.broadcast %cst_16 : f32 to vector<8x8xf32>
      %c0_17 = arith.constant 0 : index
      %c0_18 = arith.constant 0 : index
      %21 = vector.load %arg5[%c0_17, %c0_18] : memref<8x8xf32, #tpu.memory_space<vmem>>, vector<8x8xf32>
      tpu.vector_store %arg5[%c0_17, %c0_18], %20 {strides = array<i32>} : memref<8x8xf32, #tpu.memory_space<vmem>>, vector<8x8xf32>,
      %cst_19 = arith.constant 0.000000e+00 : f32
      %22 = vector.broadcast %cst_19 : f32 to vector<8x8xf32>
      %c0_20 = arith.constant 0 : index
      %c0_21 = arith.constant 0 : index
      %23 = vector.load %arg6[%c0_20, %c0_21] : memref<8x8xf32, #tpu.memory_space<vmem>>, vector<8x8xf32>
      tpu.vector_store %arg6[%c0_20, %c0_21], %22 {strides = array<i32>} : memref<8x8xf32, #tpu.memory_space<vmem>>, vector<8x8xf32>,
    } else {
    }
    %c0_6 = arith.constant 0 : index
    %c0_7 = arith.constant 0 : index
    %7 = vector.load %arg5[%c0_6, %c0_7] : memref<8x8xf32, #tpu.memory_space<vmem>>, vector<8x8xf32>
    %cst_8 = arith.constant dense<0.000000e+00> : vector<8xf32>
    %8 = vector.multi_reduction <add>, %2, %cst_8 [0] : vector<512x8xf32> to vector<8xf32>
    %9 = vector.shape_cast %8 : vector<8xf32> to vector<1x8xf32>
    %10 = vector.broadcast %9 : vector<1x8xf32> to vector<8x8xf32>
    %11 = arith.addf %7, %10 : vector<8x8xf32>
    %c0_9 = arith.constant 0 : index
    %c0_10 = arith.constant 0 : index
    %12 = vector.load %arg5[%c0_9, %c0_10] : memref<8x8xf32, #tpu.memory_space<vmem>>, vector<8x8xf32>
    tpu.vector_store %arg5[%c0_9, %c0_10], %11 {strides = array<i32>} : memref<8x8xf32, #tpu.memory_space<vmem>>, vector<8x8xf32>,
    %c0_11 = arith.constant 0 : index
    %c0_12 = arith.constant 0 : index
    %13 = vector.load %arg6[%c0_11, %c0_12] : memref<8x8xf32, #tpu.memory_space<vmem>>, vector<8x8xf32>
    %14 = arith.mulf %2, %2 : vector<512x8xf32>
    %cst_13 = arith.constant dense<0.000000e+00> : vector<8xf32>
    %15 = vector.multi_reduction <add>, %14, %cst_13 [0] : vector<512x8xf32> to vector<8xf32>
    %16 = vector.shape_cast %15 : vector<8xf32> to vector<1x8xf32>
    %17 = vector.broadcast %16 : vector<1x8xf32> to vector<8x8xf32>
    %18 = arith.addf %13, %17 : vector<8x8xf32>
    %c0_14 = arith.constant 0 : index
    %c0_15 = arith.constant 0 : index
    %19 = vector.load %arg6[%c0_14, %c0_15] : memref<8x8xf32, #tpu.memory_space<vmem>>, vector<8x8xf32>
    tpu.vector_store %arg6[%c0_14, %c0_15], %18 {strides = array<i32>} : memref<8x8xf32, #tpu.memory_space<vmem>>, vector<8x8xf32>,
    return
  }
  func.func @transform_0(%arg0: i32, %arg1: i32) -> (i32, i32) {
    %c2_i32 = arith.constant 2 : i32
    %0 = arith.muli %arg0, %c2_i32 : i32
    %1 = arith.addi %0, %arg1 : i32
    %c0_i32 = arith.constant 0 : i32
    %c0_i32_0 = arith.constant 0 : i32
    return %1, %c0_i32 : i32, i32
  }
  func.func @transform_1(%arg0: i32, %arg1: i32) -> (i32, i32) {
    %c0_i32 = arith.constant 0 : i32
    %c0_i32_0 = arith.constant 0 : i32
    %c0_i32_1 = arith.constant 0 : i32
    return %c0_i32, %c0_i32_0 : i32, i32
  }
  func.func @transform_2(%arg0: i32, %arg1: i32) -> (i32, i32) {
    %c2_i32 = arith.constant 2 : i32
    %0 = arith.muli %arg0, %c2_i32 : i32
    %1 = arith.addi %0, %arg1 : i32
    %c0_i32 = arith.constant 0 : i32
    %c0_i32_0 = arith.constant 0 : i32
    return %1, %c0_i32 : i32, i32
  }
  func.func @transform_3(%arg0: i32, %arg1: i32) -> (i32, i32) {
    %c0_i32 = arith.constant 0 : i32
    %c0_i32_0 = arith.constant 0 : i32
    return %arg0, %c0_i32 : i32, i32
  }
  func.func @transform_4(%arg0: i32, %arg1: i32) -> (i32, i32) {
    %c0_i32 = arith.constant 0 : i32
    %c0_i32_0 = arith.constant 0 : i32
    return %arg0, %c0_i32 : i32, i32
  }
}

module attributes {stable_mosaic.version = 11 : i64} {
  func.func @_bn_act_kernel(%arg0: i32, %arg1: memref<32x128xf32, #tpu.memory_space<vmem>>, %arg2: memref<1x128xf32, #tpu.memory_space<vmem>>, %arg3: memref<1x128xf32, #tpu.memory_space<vmem>>, %arg4: memref<32x128xf32, #tpu.memory_space<vmem>>) attributes {dimension_semantics = [#tpu.dimension_semantics<parallel>], iteration_bounds = array<i64: 4>, scalar_prefetch = 0 : i64, scratch_operands = 0 : i64, tpu.core_type = #tpu.core_type<tc>, window_params = [{transform_indices = @transform_0, window_bounds = array<i64: 32, 128>}, {pipeline_mode = #tpu.pipeline_mode<synchronous>, transform_indices = @transform_1, window_bounds = array<i64: 1, 128>}, {pipeline_mode = #tpu.pipeline_mode<synchronous>, transform_indices = @transform_2, window_bounds = array<i64: 1, 128>}, {transform_indices = @transform_3, window_bounds = array<i64: 32, 128>}]} {
    %c0 = arith.constant 0 : index
    %c0_0 = arith.constant 0 : index
    %0 = vector.load %arg1[%c0, %c0_0] : memref<32x128xf32, #tpu.memory_space<vmem>>, vector<32x128xf32>
    %c0_1 = arith.constant 0 : index
    %c0_2 = arith.constant 0 : index
    %1 = vector.load %arg2[%c0_1, %c0_2] : memref<1x128xf32, #tpu.memory_space<vmem>>, vector<1x128xf32>
    %2 = vector.broadcast %1 : vector<1x128xf32> to vector<32x128xf32>
    %3 = arith.mulf %0, %2 : vector<32x128xf32>
    %c0_3 = arith.constant 0 : index
    %c0_4 = arith.constant 0 : index
    %4 = vector.load %arg3[%c0_3, %c0_4] : memref<1x128xf32, #tpu.memory_space<vmem>>, vector<1x128xf32>
    %5 = vector.broadcast %4 : vector<1x128xf32> to vector<32x128xf32>
    %6 = arith.addf %3, %5 : vector<32x128xf32>
    %cst = arith.constant 0.000000e+00 : f32
    %7 = vector.broadcast %cst : f32 to vector<32x128xf32>
    %8 = arith.maximumf %6, %7 : vector<32x128xf32>
    %c0_5 = arith.constant 0 : index
    %c0_6 = arith.constant 0 : index
    %9 = vector.load %arg4[%c0_5, %c0_6] : memref<32x128xf32, #tpu.memory_space<vmem>>, vector<32x128xf32>
    tpu.vector_store %arg4[%c0_5, %c0_6], %8 {strides = array<i32>} : memref<32x128xf32, #tpu.memory_space<vmem>>, vector<32x128xf32>,
    return
  }
  func.func @transform_0(%arg0: i32) -> (i32, i32) {
    %c0_i32 = arith.constant 0 : i32
    %c0_i32_0 = arith.constant 0 : i32
    return %arg0, %c0_i32 : i32, i32
  }
  func.func @transform_1(%arg0: i32) -> (i32, i32) {
    %c0_i32 = arith.constant 0 : i32
    %c0_i32_0 = arith.constant 0 : i32
    %c0_i32_1 = arith.constant 0 : i32
    return %c0_i32, %c0_i32_0 : i32, i32
  }
  func.func @transform_2(%arg0: i32) -> (i32, i32) {
    %c0_i32 = arith.constant 0 : i32
    %c0_i32_0 = arith.constant 0 : i32
    %c0_i32_1 = arith.constant 0 : i32
    return %c0_i32, %c0_i32_0 : i32, i32
  }
  func.func @transform_3(%arg0: i32) -> (i32, i32) {
    %c0_i32 = arith.constant 0 : i32
    %c0_i32_0 = arith.constant 0 : i32
    return %arg0, %c0_i32 : i32, i32
  }
}

</mosaic_0001>

<llo_original>
// kernel: deconv_bn_act_2d.2
$region0: #{deconv_bn_act_2d.2}
  #allocation0 [shape = 'u32[]', space=smem, size = 0x4, offset = 0x4, fixed_abs, tag = 'smem constant byte address 0x4 - core index']
  #allocation1 [shape = 'u32[144,128]{1,0:T(1,128)}', space=vmem, size = 0x12000, scoped, tag = 'internal scratch']
  %s0 = inlined_call_operand.vmem [shape: f32[2048,36], index: 0, kind: input, shape index: {}]
  %s1 = inlined_call_operand.vmem [shape: f32[36,8], index: 1, kind: input, shape index: {}]
  %s2 = inlined_call_operand.vmem [shape: f32[2048,8], index: 2, kind: output, shape index: {0}]
  %s3 = inlined_call_operand.vmem [shape: f32[16,8], index: 3, kind: output, shape index: {1}]
  %s4 = inlined_call_operand.vmem [shape: f32[16,8], index: 4, kind: output, shape index: {2}]
  %5 = xla_tuple %s2, %s3, %s4
  %s6 = sld [smem:[#allocation0]]
  $region61: #{deconv_bn_act_2d.2} parent=0
    _
  %s8 = ssub.s32 1, %s6
  %s9 = scalar_select 0, %s8, %s6
  loop: start=0, step=1, limit=6
  $region2: #{deconv_bn_act_2d.2} parent=0 // loop_pre_header
    _
  $region3: #{deconv_bn_act_2d.2} parent=0 // loop_header
    %s11 = sphi 0, %s15
    %p12 = scmp.ge.s32.totalorder %s11, 6
    %s18 = sphi 0, %s30
    %s19 = sphi 0, %s26
    %s20 = sphi 0, %s18
    %s21 = sphi 0, %s19
    %s22 = sphi 0, %s20
    %s23 = sphi 0, %s21
    %s37 = sphi 0, %s39
    %s40 = sphi 0, %s37
    %s41 = sphi 0, %s40
    %s57 = sphi 0, %s41
    %s61 = sphi 0, %s61
    %s63 = sphi 0, %s61
    %s64 = sphi 0, %s63
    %s78 = sphi 0, %s64
    %s88 = sphi 0, %s90
    %s91 = sphi 0, %s88
    %s92 = sphi 0, %s91
    %s108 = sphi 0, %s92
    %s114 = sphi 0, %s116
    %s117 = sphi 0, %s114
    %s118 = sphi 0, %s117
    %s134 = sphi 0, %s118
    %s140 = sphi 0, %s142
    %s143 = sphi 0, %s140
    %s144 = sphi 0, %s143
    %s160 = sphi 0, %s144
  $region4: #{deconv_bn_act_2d.2} parent=0 // loop_header_branch
    %14 = sbr.rel (%p12) target = $region8
  $region5: #{deconv_bn_act_2d.2} parent=0 // loop_body
    %s16 = ssub.s32 %s11, 1
    %s17 = ssub.s32 %s11, 2
    %s24 = sadd.s32 1, %s19
    %p25 = scmp.ge.s32.totalorder %s24, 2
    %s26 = scalar_select %p25, 0, %s24
    %s27 = sadd.s32 1, %s18
    %s28 = scalar_select %p25, %s27, %s18
    %p29 = scmp.ge.s32.totalorder %s28, 2
    %s30 = scalar_select %p29, 0, %s28
    %s31 = smul.u32 %s18, 2
    %s32 = sadd.s32 %s31, %s19
    %s33 = smul.u32 %s30, 2
    %s34 = sadd.s32 %s33, %s26
    %s35 = ssub.s32 %s32, %s34
    %p36 = scmp.eq.s32.totalorder %s35, 0
    %s38 = sadd.s32 %s37, 1
    %s39 = scalar_select %p36, %s37, %s38
    %p42 = pneg %p36
    %p43 = scmp.eq.s32.totalorder %s11, 3
    %p44 = por %p42, %p43
    %p45 = scmp.ne.s32.totalorder %s37, %s40
    %p46 = scmp.eq.s32.totalorder %s11, 0
    %p47 = por %p45, %p46
    %p48 = scmp.ne.s32.totalorder %s37, %s40
    %p49 = scmp.eq.s32.totalorder %s16, 3
    %p50 = por %p48, %p49
    %p51 = scmp.ne.s32.totalorder %s40, %s41
    %p52 = scmp.eq.s32.totalorder %s16, 0
    %p53 = por %p51, %p52
    %p54 = scmp.ne.s32.totalorder %s40, %s41
    %p55 = scmp.eq.s32.totalorder %s17, 3
    %p56 = por %p54, %p55
    %p58 = scmp.ne.s32.totalorder %s41, %s57
    %p59 = scmp.eq.s32.totalorder %s17, 0
    %p60 = por %p58, %p59
    %s62 = sadd.s32 %s61, 1
    %p65 = scmp.eq.s32.totalorder %s11, 3
    %p66 = scmp.ne.s32.totalorder %s61, %s63
    %p67 = scmp.eq.s32.totalorder %s11, 0
    %p68 = por %p66, %p67
    %p69 = scmp.ne.s32.totalorder %s61, %s63
    %p70 = scmp.eq.s32.totalorder %s16, 3
    %p71 = por %p69, %p70
    %p72 = scmp.ne.s32.totalorder %s63, %s64
    %p73 = scmp.eq.s32.totalorder %s16, 0
    %p74 = por %p72, %p73
    %p75 = scmp.ne.s32.totalorder %s63, %s64
    %p76 = scmp.eq.s32.totalorder %s17, 3
    %p77 = por %p75, %p76
    %p79 = scmp.ne.s32.totalorder %s64, %s78
    %p80 = scmp.eq.s32.totalorder %s17, 0
    %p81 = por %p79, %p80
    %s82 = smul.u32 %s18, 2
    %s83 = sadd.s32 %s82, %s19
    %s84 = smul.u32 %s30, 2
    %s85 = sadd.s32 %s84, %s26
    %s86 = ssub.s32 %s83, %s85
    %p87 = scmp.eq.s32.totalorder %s86, 0
    %s89 = sadd.s32 %s88, 1
    %s90 = scalar_select %p87, %s88, %s89
    %p93 = pneg %p87
    %p94 = scmp.eq.s32.totalorder %s11, 3
    %p95 = por %p93, %p94
    %p96 = scmp.ne.s32.totalorder %s88, %s91
    %p97 = scmp.eq.s32.totalorder %s11, 0
    %p98 = por %p96, %p97
    %p99 = scmp.ne.s32.totalorder %s88, %s91
    %p100 = scmp.eq.s32.totalorder %s16, 3
    %p101 = por %p99, %p100
    %p102 = scmp.ne.s32.totalorder %s91, %s92
    %p103 = scmp.eq.s32.totalorder %s16, 0
    %p104 = por %p102, %p103
    %p105 = scmp.ne.s32.totalorder %s91, %s92
    %p106 = scmp.eq.s32.totalorder %s17, 3
    %p107 = por %p105, %p106
    %p109 = scmp.ne.s32.totalorder %s92, %s108
    %p110 = scmp.eq.s32.totalorder %s17, 0
    %p111 = por %p109, %p110
    %s112 = ssub.s32 %s18, %s30
    %p113 = scmp.eq.s32.totalorder %s112, 0
    %s115 = sadd.s32 %s114, 1
    %s116 = scalar_select %p113, %s114, %s115
    %p119 = pneg %p113
    %p120 = scmp.eq.s32.totalorder %s11, 3
    %p121 = por %p119, %p120
    %p122 = scmp.ne.s32.totalorder %s114, %s117
    %p123 = scmp.eq.s32.totalorder %s11, 0
    %p124 = por %p122, %p123
    %p125 = scmp.ne.s32.totalorder %s114, %s117
    %p126 = scmp.eq.s32.totalorder %s16, 3
    %p127 = por %p125, %p126
    %p128 = scmp.ne.s32.totalorder %s117, %s118
    %p129 = scmp.eq.s32.totalorder %s16, 0
    %p130 = por %p128, %p129
    %p131 = scmp.ne.s32.totalorder %s117, %s118
    %p132 = scmp.eq.s32.totalorder %s17, 3
    %p133 = por %p131, %p132
    %p135 = scmp.ne.s32.totalorder %s118, %s134
    %p136 = scmp.eq.s32.totalorder %s17, 0
    %p137 = por %p135, %p136
    %s138 = ssub.s32 %s18, %s30
    %p139 = scmp.eq.s32.totalorder %s138, 0
    %s141 = sadd.s32 %s140, 1
    %s142 = scalar_select %p139, %s140, %s141
    %p145 = pneg %p139
    %p146 = scmp.eq.s32.totalorder %s11, 3
    %p147 = por %p145, %p146
    %p148 = scmp.ne.s32.totalorder %s140, %s143
    %p149 = scmp.eq.s32.totalorder %s11, 0
    %p150 = por %p148, %p149
    %p151 = scmp.ne.s32.totalorder %s140, %s143
    %p152 = scmp.eq.s32.totalorder %s16, 3
    %p153 = por %p151, %p152
    %p154 = scmp.ne.s32.totalorder %s143, %s144
    %p155 = scmp.eq.s32.totalorder %s16, 0
    %p156 = por %p154, %p155
    %p157 = scmp.ne.s32.totalorder %s143, %s144
    %p158 = scmp.eq.s32.totalorder %s17, 3
    %p159 = por %p157, %p158
    %p161 = scmp.ne.s32.totalorder %s144, %s160
    %p162 = scmp.eq.s32.totalorder %s17, 0
    %p163 = por %p161, %p162
    %p164 = scmp.le.s32.totalorder 1, %s11
    %p165 = scmp.lt.s32.totalorder %s11, 5
    %p166 = pnand %p164, %p165
    %p167 = pneg %p166
    // Predicated region
    $region9: #{deconv_bn_act_2d.2} parent=5 // pred_check
      _
    $region10: #{deconv_bn_act_2d.2} parent=5 // pred_check_branch
      %169 = sbr.rel (%p166) target = $region12
    $region11: #{deconv_bn_act_2d.2} parent=5 // pred_region
      %s170 = ssub.s32 %s11, 1
      // Predicated region
      $region13: #{deconv_bn_act_2d.2} parent=11 // pred_check
        %p171 = pneg %p74
      $region14: #{deconv_bn_act_2d.2} parent=11 // pred_check_branch
        %173 = sbr.rel (%p171) target = $region16
      $region15: #{deconv_bn_act_2d.2} parent=11 // pred_region
        _
      $region16: #{deconv_bn_act_2d.2} parent=11 // pred_fallthru
        _
    $region12: #{deconv_bn_act_2d.2} parent=5 // pred_fallthru
      _
    %p174 = scmp.lt.s32.totalorder %s11, 4
    // Predicated region
    $region17: #{deconv_bn_act_2d.2} parent=5 // pred_check
      %p175 = pneg %p174
    $region18: #{deconv_bn_act_2d.2} parent=5 // pred_check_branch
      %177 = sbr.rel (%p175) target = $region20
    $region19: #{deconv_bn_act_2d.2} parent=5 // pred_region
      // Predicated region
      $region21: #{deconv_bn_act_2d.2} parent=19 // pred_check
        %p178 = pneg %p47
      $region22: #{deconv_bn_act_2d.2} parent=19 // pred_check_branch
        %180 = sbr.rel (%p178) target = $region24
      $region23: #{deconv_bn_act_2d.2} parent=19 // pred_region
        %s181 = smul.u32 %s18, 2
        %s182 = sadd.s32 %s181, %s19
        %s183 = smul.u32 64, %s182
        %p184 = scmp.lt.s32.totalorder %s183, 255
        %s185 = scalar_select %p184, %s183, 255
        %s186 = smul.addr %s185, 8
        %s187 = scalar_lea.vmem %s0, %s186
        %s188 = smul.u32 %s18, 2
        %s189 = sadd.s32 %s188, %s19
        %s190 = smul.u32 64, %s189
      $region24: #{deconv_bn_act_2d.2} parent=19 // pred_fallthru
        _
    $region20: #{deconv_bn_act_2d.2} parent=5 // pred_fallthru
      _
    %p191 = scmp.le.s32.totalorder 1, %s11
    %p192 = scmp.lt.s32.totalorder %s11, 5
    %p193 = pnand %p191, %p192
    %p194 = pneg %p193
    // Predicated region
    $region25: #{deconv_bn_act_2d.2} parent=5 // pred_check
      _
    $region26: #{deconv_bn_act_2d.2} parent=5 // pred_check_branch
      %196 = sbr.rel (%p193) target = $region28
    $region27: #{deconv_bn_act_2d.2} parent=5 // pred_region
      %s197 = ssub.s32 %s11, 1
      %s198 = smul.u32 %s20, 2
      %s199 = sadd.s32 %s198, %s21
      %s200 = smul.u32 64, %s199
      %p201 = scmp.lt.s32.totalorder %s200, 255
      %s202 = scalar_select %p201, %s200, 255
      %s203 = smul.addr %s202, 8
      %s204 = scalar_lea.vmem %s0, %s203
      %p205 = pneg %p53
      %p206 = pneg %p50
      %p207 = pneg %p74
      %p208 = pneg %p71
      %p209 = pneg %p104
      %p210 = pneg %p101
      %s211 = smul.u32 %s20, 2
      %s212 = sadd.s32 %s211, %s21
      %s213 = smul.u32 64, %s212
      %p214 = scmp.lt.s32.totalorder %s213, 255
      %s215 = scalar_select %p214, %s213, 255
      %s216 = smul.addr %s215, 8
      %s217 = scalar_lea.vmem %s2, %s216
      %p218 = pneg %p130
      %p219 = pneg %p127
      %p220 = scmp.lt.s32.totalorder %s20, 1
      %s221 = scalar_select %p220, %s20, 1
      %s222 = smul.addr %s221, 8
      %s223 = scalar_lea.vmem %s3, %s222
      %p224 = pneg %p156
      %p225 = pneg %p153
      %p226 = scmp.lt.s32.totalorder %s20, 1
      %s227 = scalar_select %p226, %s20, 1
      %s228 = smul.addr %s227, 8
      %s229 = scalar_lea.vmem %s4, %s228
      %s230 = smul.u32 %s20, 2
      %s231 = sadd.s32 %s230, %s21
      %s232 = smul.u32 64, %s231
      %p233 = scmp.lt.s32.totalorder %s232, 255
      %s234 = scalar_select %p233, %s232, 255
      %s235 = smul.addr %s234, 8
      %s236 = scalar_lea.vmem %s0, %s235
      %s237 = smul.u32 %s20, 2
      %s238 = sadd.s32 %s237, %s21
      %s239 = smul.u32 64, %s238
      %s240 = smul.u32 %s20, 2
      %s241 = sadd.s32 %s240, %s21
      %s242 = smul.u32 64, %s241
      %p243 = scmp.lt.s32.totalorder %s242, 255
      %s244 = scalar_select %p243, %s242, 255
      %s245 = smul.addr %s244, 8
      %s246 = scalar_lea.vmem %s2, %s245
      %s247 = smul.u32 %s20, 2
      %s248 = sadd.s32 %s247, %s21
      %s249 = smul.u32 64, %s248
      %p250 = scmp.lt.s32.totalorder %s20, 1
      %s251 = scalar_select %p250, %s20, 1
      %s252 = smul.addr %s251, 8
      %s253 = scalar_lea.vmem %s3, %s252
      %p254 = scmp.lt.s32.totalorder %s20, 1
      %s255 = scalar_select %p254, %s20, 1
      %s256 = smul.addr %s255, 8
      %s257 = scalar_lea.vmem %s4, %s256
      %v258 = vld [vmem:[%s236] sm:$0xff]
      %v259 = vld [vmem:[%s236 + $0x8] sm:$0xff]
      %v260 = vld [vmem:[%s236 + $0x10] sm:$0xff]
      %v261 = vld [vmem:[%s236 + $0x18] sm:$0xff]
      %v262 = vld [vmem:[%s236 + $0x20] sm:$0xff]
      %v263 = vld [vmem:[%s236 + $0x28] sm:$0xff]
      %v264 = vld [vmem:[%s236 + $0x30] sm:$0xff]
      %v265 = vld [vmem:[%s236 + $0x38] sm:$0xff]
      %v266 = vld [vmem:[%s236 + $0x40] sm:$0xff]
      %v267 = vld [vmem:[%s236 + $0x48] sm:$0xff]
      %v268 = vld [vmem:[%s236 + $0x50] sm:$0xff]
      %v269 = vld [vmem:[%s236 + $0x58] sm:$0xff]
      %v270 = vld [vmem:[%s236 + $0x60] sm:$0xff]
      %v271 = vld [vmem:[%s236 + $0x68] sm:$0xff]
      %v272 = vld [vmem:[%s236 + $0x70] sm:$0xff]
      %v273 = vld [vmem:[%s236 + $0x78] sm:$0xff]
      %v274 = vld [vmem:[%s236 + $0x80] sm:$0xff]
      %v275 = vld [vmem:[%s236 + $0x88] sm:$0xff]
      %v276 = vld [vmem:[%s236 + $0x90] sm:$0xff]
      %v277 = vld [vmem:[%s236 + $0x98] sm:$0xff]
      %v278 = vld [vmem:[%s236 + $0xa0] sm:$0xff]
      %v279 = vld [vmem:[%s236 + $0xa8] sm:$0xff]
      %v280 = vld [vmem:[%s236 + $0xb0] sm:$0xff]
      %v281 = vld [vmem:[%s236 + $0xb8] sm:$0xff]
      %v282 = vld [vmem:[%s236 + $0xc0] sm:$0xff]
      %v283 = vld [vmem:[%s236 + $0xc8] sm:$0xff]
      %v284 = vld [vmem:[%s236 + $0xd0] sm:$0xff]
      %v285 = vld [vmem:[%s236 + $0xd8] sm:$0xff]
      %v286 = vld [vmem:[%s236 + $0xe0] sm:$0xff]
      %v287 = vld [vmem:[%s236 + $0xe8] sm:$0xff]
      %v288 = vld [vmem:[%s236 + $0xf0] sm:$0xff]
      %v289 = vld [vmem:[%s236 + $0xf8] sm:$0xff]
      %v290 = vld [vmem:[%s236 + $0x100] sm:$0xff]
      %v291 = vld [vmem:[%s236 + $0x108] sm:$0xff]
      %v292 = vld [vmem:[%s236 + $0x110] sm:$0xff]
      %v293 = vld [vmem:[%s236 + $0x118] sm:$0xff]
      %v294 = vld [vmem:[%s236 + $0x120] sm:$0xff]
      %v295 = vld [vmem:[%s236 + $0x128] sm:$0xff]
      %v296 = vld [vmem:[%s236 + $0x130] sm:$0xff]
      %v297 = vld [vmem:[%s236 + $0x138] sm:$0xff]
      %v298 = vld [vmem:[%s236 + $0x140] sm:$0xff]
      %v299 = vld [vmem:[%s236 + $0x148] sm:$0xff]
      %v300 = vld [vmem:[%s236 + $0x150] sm:$0xff]
      %v301 = vld [vmem:[%s236 + $0x158] sm:$0xff]
      %v302 = vld [vmem:[%s236 + $0x160] sm:$0xff]
      %v303 = vld [vmem:[%s236 + $0x168] sm:$0xff]
      %v304 = vld [vmem:[%s236 + $0x170] sm:$0xff]
      %v305 = vld [vmem:[%s236 + $0x178] sm:$0xff]
      %v306 = vld [vmem:[%s236 + $0x180] sm:$0xff]
      %v307 = vld [vmem:[%s236 + $0x188] sm:$0xff]
      %v308 = vld [vmem:[%s236 + $0x190] sm:$0xff]
      %v309 = vld [vmem:[%s236 + $0x198] sm:$0xff]
      %v310 = vld [vmem:[%s236 + $0x1a0] sm:$0xff]
      %v311 = vld [vmem:[%s236 + $0x1a8] sm:$0xff]
      %v312 = vld [vmem:[%s236 + $0x1b0] sm:$0xff]
      %v313 = vld [vmem:[%s236 + $0x1b8] sm:$0xff]
      %v314 = vld [vmem:[%s236 + $0x1c0] sm:$0xff]
      %v315 = vld [vmem:[%s236 + $0x1c8] sm:$0xff]
      %v316 = vld [vmem:[%s236 + $0x1d0] sm:$0xff]
      %v317 = vld [vmem:[%s236 + $0x1d8] sm:$0xff]
      %v318 = vld [vmem:[%s236 + $0x1e0] sm:$0xff]
      %v319 = vld [vmem:[%s236 + $0x1e8] sm:$0xff]
      %v320 = vld [vmem:[%s236 + $0x1f0] sm:$0xff]
      %v321 = vld [vmem:[%s236 + $0x1f8] sm:$0xff]
      %v322 = vld [vmem:[%s1] sm:$0xff]
      %v323 = vld [vmem:[%s1 + $0x8] sm:$0xff]
      %v324 = vld [vmem:[%s1 + $0x10] sm:$0xff]
      %v325 = vld [vmem:[%s1 + $0x18] sm:$0xff]
      %v326 = vld [vmem:[%s1 + $0x20] sm:$0xf]
      %vm327 = vcmask 293888
      %v329 = vsel %vm327, %v258, 0
      %v332 = vsel %vm327, %v259, 0
      %v335 = vsel %vm327, %v260, 0
      %v338 = vsel %vm327, %v261, 0
      %v341 = vsel %vm327, %v262, 0
      %v344 = vsel %vm327, %v263, 0
      %v347 = vsel %vm327, %v264, 0
      %v350 = vsel %vm327, %v265, 0
      %v353 = vsel %vm327, %v266, 0
      %v356 = vsel %vm327, %v267, 0
      %v359 = vsel %vm327, %v268, 0
      %v362 = vsel %vm327, %v269, 0
      %v365 = vsel %vm327, %v270, 0
      %v368 = vsel %vm327, %v271, 0
      %v371 = vsel %vm327, %v272, 0
      %v374 = vsel %vm327, %v273, 0
      %v377 = vsel %vm327, %v274, 0
      %v380 = vsel %vm327, %v275, 0
      %v383 = vsel %vm327, %v276, 0
      %v386 = vsel %vm327, %v277, 0
      %v389 = vsel %vm327, %v278, 0
      %v392 = vsel %vm327, %v279, 0
      %v395 = vsel %vm327, %v280, 0
      %v398 = vsel %vm327, %v281, 0
      %v401 = vsel %vm327, %v282, 0
      %v404 = vsel %vm327, %v283, 0
      %v407 = vsel %vm327, %v284, 0
      %v410 = vsel %vm327, %v285, 0
      %v413 = vsel %vm327, %v286, 0
      %v416 = vsel %vm327, %v287, 0
      %v419 = vsel %vm327, %v288, 0
      %v422 = vsel %vm327, %v289, 0
      %v425 = vsel %vm327, %v290, 0
      %v428 = vsel %vm327, %v291, 0
      %v431 = vsel %vm327, %v292, 0
      %v434 = vsel %vm327, %v293, 0
      %v437 = vsel %vm327, %v294, 0
      %v440 = vsel %vm327, %v295, 0
      %v443 = vsel %vm327, %v296, 0
      %v446 = vsel %vm327, %v297, 0
      %v449 = vsel %vm327, %v298, 0
      %v452 = vsel %vm327, %v299, 0
      %v455 = vsel %vm327, %v300, 0
      %v458 = vsel %vm327, %v301, 0
      %v461 = vsel %vm327, %v302, 0
      %v464 = vsel %vm327, %v303, 0
      %v467 = vsel %vm327, %v304, 0
      %v470 = vsel %vm327, %v305, 0
      %v473 = vsel %vm327, %v306, 0
      %v476 = vsel %vm327, %v307, 0
      %v479 = vsel %vm327, %v308, 0
      %v482 = vsel %vm327, %v309, 0
      %v485 = vsel %vm327, %v310, 0
      %v488 = vsel %vm327, %v311, 0
      %v491 = vsel %vm327, %v312, 0
      %v494 = vsel %vm327, %v313, 0
      %v497 = vsel %vm327, %v314, 0
      %v500 = vsel %vm327, %v315, 0
      %v503 = vsel %vm327, %v316, 0
      %v506 = vsel %vm327, %v317, 0
      %v509 = vsel %vm327, %v318, 0
      %v512 = vsel %vm327, %v319, 0
      %v515 = vsel %vm327, %v320, 0
      %v518 = vsel %vm327, %v321, 0
      %vm520 = vcmask 1043456
      %v522 = vsel %vm520, %v326, 0
      %524 = vmatprep.subr.mxu0 0.0
      %525 = vmatpush1.msra.mxu0 0.0
      %526 = vmatprep.subr.mxu0 0.0
      %527 = vmatpush1.msra.mxu0 0.0
      %528 = vmatprep.subr.mxu0 0.0
      %529 = vmatpush1.msra.mxu0 0.0
      %530 = vmatprep.subr.mxu0 0.0
      %531 = vmatpush1.msra.mxu0 0.0
      %532 = vmatprep.subr.mxu0 0.0
      %533 = vmatpush1.msra.mxu0 0.0
      %534 = vmatprep.subr.mxu0 0.0
      %535 = vmatpush1.msra.mxu0 0.0
      %536 = vmatprep.subr.mxu0 0.0
      %537 = vmatpush1.msra.mxu0 0.0
      %538 = vmatprep.subr.mxu0 0.0
      %539 = vmatpush1.msra.mxu0 0.0
      %540 = vmatprep.subr.mxu0 0.0
      %541 = vmatpush1.msra.mxu0 0.0
      %542 = vmatprep.subr.mxu0 0.0
      %543 = vmatpush1.msra.mxu0 0.0
      %544 = vmatprep.subr.mxu0 0.0
      %545 = vmatpush1.msra.mxu0 0.0
      %546 = vmatprep.subr.mxu0 0.0
      %547 = vmatpush1.msra.mxu0 %v522
      %548 = vmatprep.subr.mxu0 0.0
      %549 = vmatpush1.msra.mxu0 %v325
      %550 = vmatprep.subr.mxu0 0.0
      %551 = vmatpush1.msra.mxu0 %v324
      %552 = vmatprep.subr.mxu0 0.0
      %553 = vmatpush1.msra.mxu0 %v323
      %554 = vmatprep.subr.mxu0 0.0
      %555 = vmatpush1.msra.mxu0 %v322
      %556 = vmatprep.subr.mxu0 0.0
      %557 = vmatpush2.msra.mxu0 0.0
      %558 = vmatprep.subr.mxu0 0.0
      %559 = vmatpush2.msra.mxu0 0.0
      %560 = vmatprep.subr.mxu0 0.0
      %561 = vmatpush2.msra.mxu0 0.0
      %562 = vmatprep.subr.mxu0 0.0
      %563 = vmatpush2.msra.mxu0 0.0
      %564 = vmatprep.subr.mxu0 0.0
      %565 = vmatpush2.msra.mxu0 0.0
      %566 = vmatprep.subr.mxu0 0.0
      %567 = vmatpush2.msra.mxu0 0.0
      %568 = vmatprep.subr.mxu0 0.0
      %569 = vmatpush2.msra.mxu0 0.0
      %570 = vmatprep.subr.mxu0 0.0
      %571 = vmatpush2.msra.mxu0 0.0
      %572 = vmatprep.subr.mxu0 0.0
      %573 = vmatpush2.msra.mxu0 0.0
      %574 = vmatprep.subr.mxu0 0.0
      %575 = vmatpush2.msra.mxu0 0.0
      %576 = vmatprep.subr.mxu0 0.0
      %577 = vmatpush2.msra.mxu0 0.0
      %578 = vmatprep.subr.mxu0 0.0
      %579 = vmatpush2.msra.mxu0 0.0
      %580 = vmatprep.subr.mxu0 0.0
      %581 = vmatpush2.msra.mxu0 0.0
      %582 = vmatprep.subr.mxu0 0.0
      %583 = vmatpush2.msra.mxu0 0.0
      %584 = vmatprep.subr.mxu0 0.0
      %585 = vmatpush2.msra.mxu0 0.0
      %586 = vmatprep.subr.mxu0 0.0
      %587 = vmatpush2.msra.mxu0 0.0
      %588 = vmatprep.mubr.f32.mxu0 0.0
      %589 = vmatmul.mubr.f32.gmra.mxu0 %v329
      %v590 = vpop.f32.mrf.mxu0
      %v591 = vadd.f32 0.0, %v590
      %v592 = vpop.f32.mrf.mxu0
      %593 = vmatprep.mubr.f32.mxu0 0.0
      %594 = vmatmul.mubr.f32.gmra.mxu0 %v332
      %v595 = vpop.f32.mrf.mxu0
      %v596 = vadd.f32 0.0, %v595
      %v597 = vpop.f32.mrf.mxu0
      %598 = vmatprep.mubr.f32.mxu0 0.0
      %599 = vmatmul.mubr.f32.gmra.mxu0 %v335
      %v600 = vpop.f32.mrf.mxu0
      %v601 = vadd.f32 0.0, %v600
      %v602 = vpop.f32.mrf.mxu0
      %603 = vmatprep.mubr.f32.mxu0 0.0
      %604 = vmatmul.mubr.f32.gmra.mxu0 %v338
      %v605 = vpop.f32.mrf.mxu0
      %v606 = vadd.f32 0.0, %v605
      %v607 = vpop.f32.mrf.mxu0
      %608 = vmatprep.mubr.f32.mxu0 0.0
      %609 = vmatmul.mubr.f32.gmra.mxu0 %v341
      %v610 = vpop.f32.mrf.mxu0
      %v611 = vadd.f32 0.0, %v610
      %v612 = vpop.f32.mrf.mxu0
      %613 = vmatprep.mubr.f32.mxu0 0.0
      %614 = vmatmul.mubr.f32.gmra.mxu0 %v344
      %v615 = vpop.f32.mrf.mxu0
      %v616 = vadd.f32 0.0, %v615
      %v617 = vpop.f32.mrf.mxu0
      %618 = vmatprep.mubr.f32.mxu0 0.0
      %619 = vmatmul.mubr.f32.gmra.mxu0 %v347
      %v620 = vpop.f32.mrf.mxu0
      %v621 = vadd.f32 0.0, %v620
      %v622 = vpop.f32.mrf.mxu0
      %623 = vmatprep.mubr.f32.mxu0 0.0
      %624 = vmatmul.mubr.f32.gmra.mxu0 %v350
      %v625 = vpop.f32.mrf.mxu0
      %v626 = vadd.f32 0.0, %v625
      %v627 = vpop.f32.mrf.mxu0
      %628 = vmatprep.mubr.f32.mxu0 0.0
      %629 = vmatmul.mubr.f32.gmra.mxu0 %v353
      %v630 = vpop.f32.mrf.mxu0
      %v631 = vadd.f32 0.0, %v630
      %v632 = vpop.f32.mrf.mxu0
      %633 = vmatprep.mubr.f32.mxu0 0.0
      %634 = vmatmul.mubr.f32.gmra.mxu0 %v356
      %v635 = vpop.f32.mrf.mxu0
      %v636 = vadd.f32 0.0, %v635
      %v637 = vpop.f32.mrf.mxu0
      %638 = vmatprep.mubr.f32.mxu0 0.0
      %639 = vmatmul.mubr.f32.gmra.mxu0 %v359
      %v640 = vpop.f32.mrf.mxu0
      %v641 = vadd.f32 0.0, %v640
      %v642 = vpop.f32.mrf.mxu0
      %643 = vmatprep.mubr.f32.mxu0 0.0
      %644 = vmatmul.mubr.f32.gmra.mxu0 %v362
      %v645 = vpop.f32.mrf.mxu0
      %v646 = vadd.f32 0.0, %v645
      %v647 = vpop.f32.mrf.mxu0
      %648 = vmatprep.mubr.f32.mxu0 0.0
      %649 = vmatmul.mubr.f32.gmra.mxu0 %v365
      %v650 = vpop.f32.mrf.mxu0
      %v651 = vadd.f32 0.0, %v650
      %v652 = vpop.f32.mrf.mxu0
      %653 = vmatprep.mubr.f32.mxu0 0.0
      %654 = vmatmul.mubr.f32.gmra.mxu0 %v368
      %v655 = vpop.f32.mrf.mxu0
      %v656 = vadd.f32 0.0, %v655
      %v657 = vpop.f32.mrf.mxu0
      %658 = vmatprep.mubr.f32.mxu0 0.0
      %659 = vmatmul.mubr.f32.gmra.mxu0 %v371
      %v660 = vpop.f32.mrf.mxu0
      %v661 = vadd.f32 0.0, %v660
      %v662 = vpop.f32.mrf.mxu0
      %663 = vmatprep.mubr.f32.mxu0 0.0
      %664 = vmatmul.mubr.f32.gmra.mxu0 %v374
      %v665 = vpop.f32.mrf.mxu0
      %v666 = vadd.f32 0.0, %v665
      %v667 = vpop.f32.mrf.mxu0
      %668 = vmatprep.mubr.f32.mxu0 0.0
      %669 = vmatmul.mubr.f32.gmra.mxu0 %v377
      %v670 = vpop.f32.mrf.mxu0
      %v671 = vadd.f32 0.0, %v670
      %v672 = vpop.f32.mrf.mxu0
      %673 = vmatprep.mubr.f32.mxu0 0.0
      %674 = vmatmul.mubr.f32.gmra.mxu0 %v380
      %v675 = vpop.f32.mrf.mxu0
      %v676 = vadd.f32 0.0, %v675
      %v677 = vpop.f32.mrf.mxu0
      %678 = vmatprep.mubr.f32.mxu0 0.0
      %679 = vmatmul.mubr.f32.gmra.mxu0 %v383
      %v680 = vpop.f32.mrf.mxu0
      %v681 = vadd.f32 0.0, %v680
      %v682 = vpop.f32.mrf.mxu0
      %683 = vmatprep.mubr.f32.mxu0 0.0
      %684 = vmatmul.mubr.f32.gmra.mxu0 %v386
      %v685 = vpop.f32.mrf.mxu0
      %v686 = vadd.f32 0.0, %v685
      %v687 = vpop.f32.mrf.mxu0
      %688 = vmatprep.mubr.f32.mxu0 0.0
      %689 = vmatmul.mubr.f32.gmra.mxu0 %v389
      %v690 = vpop.f32.mrf.mxu0
      %v691 = vadd.f32 0.0, %v690
      %v692 = vpop.f32.mrf.mxu0
      %693 = vmatprep.mubr.f32.mxu0 0.0
      %694 = vmatmul.mubr.f32.gmra.mxu0 %v392
      %v695 = vpop.f32.mrf.mxu0
      %v696 = vadd.f32 0.0, %v695
      %v697 = vpop.f32.mrf.mxu0
      %698 = vmatprep.mubr.f32.mxu0 0.0
      %699 = vmatmul.mubr.f32.gmra.mxu0 %v395
      %v700 = vpop.f32.mrf.mxu0
      %v701 = vadd.f32 0.0, %v700
      %v702 = vpop.f32.mrf.mxu0
      %703 = vmatprep.mubr.f32.mxu0 0.0
      %704 = vmatmul.mubr.f32.gmra.mxu0 %v398
      %v705 = vpop.f32.mrf.mxu0
      %v706 = vadd.f32 0.0, %v705
      %v707 = vpop.f32.mrf.mxu0
      %708 = vmatprep.mubr.f32.mxu0 0.0
      %709 = vmatmul.mubr.f32.gmra.mxu0 %v401
      %v710 = vpop.f32.mrf.mxu0
      %v711 = vadd.f32 0.0, %v710
      %v712 = vpop.f32.mrf.mxu0
      %713 = vmatprep.mubr.f32.mxu0 0.0
      %714 = vmatmul.mubr.f32.gmra.mxu0 %v404
      %v715 = vpop.f32.mrf.mxu0
      %v716 = vadd.f32 0.0, %v715
      %v717 = vpop.f32.mrf.mxu0
      %718 = vmatprep.mubr.f32.mxu0 0.0
      %719 = vmatmul.mubr.f32.gmra.mxu0 %v407
      %v720 = vpop.f32.mrf.mxu0
      %v721 = vadd.f32 0.0, %v720
      %v722 = vpop.f32.mrf.mxu0
      %723 = vmatprep.mubr.f32.mxu0 0.0
      %724 = vmatmul.mubr.f32.gmra.mxu0 %v410
      %v725 = vpop.f32.mrf.mxu0
      %v726 = vadd.f32 0.0, %v725
      %v727 = vpop.f32.mrf.mxu0
      %728 = vmatprep.mubr.f32.mxu0 0.0
      %729 = vmatmul.mubr.f32.gmra.mxu0 %v413
      %v730 = vpop.f32.mrf.mxu0
      %v731 = vadd.f32 0.0, %v730
      %v732 = vpop.f32.mrf.mxu0
      %733 = vmatprep.mubr.f32.mxu0 0.0
      %734 = vmatmul.mubr.f32.gmra.mxu0 %v416
      %v735 = vpop.f32.mrf.mxu0
      %v736 = vadd.f32 0.0, %v735
      %v737 = vpop.f32.mrf.mxu0
      %738 = vmatprep.mubr.f32.mxu0 0.0
      %739 = vmatmul.mubr.f32.gmra.mxu0 %v419
      %v740 = vpop.f32.mrf.mxu0
      %v741 = vadd.f32 0.0, %v740
      %v742 = vpop.f32.mrf.mxu0
      %743 = vmatprep.mubr.f32.mxu0 0.0
      %744 = vmatmul.mubr.f32.gmra.mxu0 %v422
      %v745 = vpop.f32.mrf.mxu0
      %v746 = vadd.f32 0.0, %v745
      %v747 = vpop.f32.mrf.mxu0
      %748 = vmatprep.mubr.f32.mxu0 0.0
      %749 = vmatmul.mubr.f32.gmra.mxu0 %v425
      %v750 = vpop.f32.mrf.mxu0
      %v751 = vadd.f32 0.0, %v750
      %v752 = vpop.f32.mrf.mxu0
      %753 = vmatprep.mubr.f32.mxu0 0.0
      %754 = vmatmul.mubr.f32.gmra.mxu0 %v428
      %v755 = vpop.f32.mrf.mxu0
      %v756 = vadd.f32 0.0, %v755
      %v757 = vpop.f32.mrf.mxu0
      %758 = vmatprep.mubr.f32.mxu0 0.0
      %759 = vmatmul.mubr.f32.gmra.mxu0 %v431
      %v760 = vpop.f32.mrf.mxu0
      %v761 = vadd.f32 0.0, %v760
      %v762 = vpop.f32.mrf.mxu0
      %763 = vmatprep.mubr.f32.mxu0 0.0
      %764 = vmatmul.mubr.f32.gmra.mxu0 %v434
      %v765 = vpop.f32.mrf.mxu0
      %v766 = vadd.f32 0.0, %v765
      %v767 = vpop.f32.mrf.mxu0
      %768 = vmatprep.mubr.f32.mxu0 0.0
      %769 = vmatmul.mubr.f32.gmra.mxu0 %v437
      %v770 = vpop.f32.mrf.mxu0
      %v771 = vadd.f32 0.0, %v770
      %v772 = vpop.f32.mrf.mxu0
      %773 = vmatprep.mubr.f32.mxu0 0.0
      %774 = vmatmul.mubr.f32.gmra.mxu0 %v440
      %v775 = vpop.f32.mrf.mxu0
      %v776 = vadd.f32 0.0, %v775
      %v777 = vpop.f32.mrf.mxu0
      %778 = vmatprep.mubr.f32.mxu0 0.0
      %779 = vmatmul.mubr.f32.gmra.mxu0 %v443
      %v780 = vpop.f32.mrf.mxu0
      %v781 = vadd.f32 0.0, %v780
      %v782 = vpop.f32.mrf.mxu0
      %783 = vmatprep.mubr.f32.mxu0 0.0
      %784 = vmatmul.mubr.f32.gmra.mxu0 %v446
      %v785 = vpop.f32.mrf.mxu0
      %v786 = vadd.f32 0.0, %v785
      %v787 = vpop.f32.mrf.mxu0
      %788 = vmatprep.mubr.f32.mxu0 0.0
      %789 = vmatmul.mubr.f32.gmra.mxu0 %v449
      %v790 = vpop.f32.mrf.mxu0
      %v791 = vadd.f32 0.0, %v790
      %v792 = vpop.f32.mrf.mxu0
      %793 = vmatprep.mubr.f32.mxu0 0.0
      %794 = vmatmul.mubr.f32.gmra.mxu0 %v452
      %v795 = vpop.f32.mrf.mxu0
      %v796 = vadd.f32 0.0, %v795
      %v797 = vpop.f32.mrf.mxu0
      %798 = vmatprep.mubr.f32.mxu0 0.0
      %799 = vmatmul.mubr.f32.gmra.mxu0 %v455
      %v800 = vpop.f32.mrf.mxu0
      %v801 = vadd.f32 0.0, %v800
      %v802 = vpop.f32.mrf.mxu0
      %803 = vmatprep.mubr.f32.mxu0 0.0
      %804 = vmatmul.mubr.f32.gmra.mxu0 %v458
      %v805 = vpop.f32.mrf.mxu0
      %v806 = vadd.f32 0.0, %v805
      %v807 = vpop.f32.mrf.mxu0
      %808 = vmatprep.mubr.f32.mxu0 0.0
      %809 = vmatmul.mubr.f32.gmra.mxu0 %v461
      %v810 = vpop.f32.mrf.mxu0
      %v811 = vadd.f32 0.0, %v810
      %v812 = vpop.f32.mrf.mxu0
      %813 = vmatprep.mubr.f32.mxu0 0.0
      %814 = vmatmul.mubr.f32.gmra.mxu0 %v464
      %v815 = vpop.f32.mrf.mxu0
      %v816 = vadd.f32 0.0, %v815
      %v817 = vpop.f32.mrf.mxu0
      %818 = vmatprep.mubr.f32.mxu0 0.0
      %819 = vmatmul.mubr.f32.gmra.mxu0 %v467
      %v820 = vpop.f32.mrf.mxu0
      %v821 = vadd.f32 0.0, %v820
      %v822 = vpop.f32.mrf.mxu0
      %823 = vmatprep.mubr.f32.mxu0 0.0
      %824 = vmatmul.mubr.f32.gmra.mxu0 %v470
      %v825 = vpop.f32.mrf.mxu0
      %v826 = vadd.f32 0.0, %v825
      %v827 = vpop.f32.mrf.mxu0
      %828 = vmatprep.mubr.f32.mxu0 0.0
      %829 = vmatmul.mubr.f32.gmra.mxu0 %v473
      %v830 = vpop.f32.mrf.mxu0
      %v831 = vadd.f32 0.0, %v830
      %v832 = vpop.f32.mrf.mxu0
      %833 = vmatprep.mubr.f32.mxu0 0.0
      %834 = vmatmul.mubr.f32.gmra.mxu0 %v476
      %v835 = vpop.f32.mrf.mxu0
      %v836 = vadd.f32 0.0, %v835
      %v837 = vpop.f32.mrf.mxu0
      %838 = vmatprep.mubr.f32.mxu0 0.0
      %839 = vmatmul.mubr.f32.gmra.mxu0 %v479
      %v840 = vpop.f32.mrf.mxu0
      %v841 = vadd.f32 0.0, %v840
      %v842 = vpop.f32.mrf.mxu0
      %843 = vmatprep.mubr.f32.mxu0 0.0
      %844 = vmatmul.mubr.f32.gmra.mxu0 %v482
      %v845 = vpop.f32.mrf.mxu0
      %v846 = vadd.f32 0.0, %v845
      %v847 = vpop.f32.mrf.mxu0
      %848 = vmatprep.mubr.f32.mxu0 0.0
      %849 = vmatmul.mubr.f32.gmra.mxu0 %v485
      %v850 = vpop.f32.mrf.mxu0
      %v851 = vadd.f32 0.0, %v850
      %v852 = vpop.f32.mrf.mxu0
      %853 = vmatprep.mubr.f32.mxu0 0.0
      %854 = vmatmul.mubr.f32.gmra.mxu0 %v488
      %v855 = vpop.f32.mrf.mxu0
      %v856 = vadd.f32 0.0, %v855
      %v857 = vpop.f32.mrf.mxu0
      %858 = vmatprep.mubr.f32.mxu0 0.0
      %859 = vmatmul.mubr.f32.gmra.mxu0 %v491
      %v860 = vpop.f32.mrf.mxu0
      %v861 = vadd.f32 0.0, %v860
      %v862 = vpop.f32.mrf.mxu0
      %863 = vmatprep.mubr.f32.mxu0 0.0
      %864 = vmatmul.mubr.f32.gmra.mxu0 %v494
      %v865 = vpop.f32.mrf.mxu0
      %v866 = vadd.f32 0.0, %v865
      %v867 = vpop.f32.mrf.mxu0
      %868 = vmatprep.mubr.f32.mxu0 0.0
      %869 = vmatmul.mubr.f32.gmra.mxu0 %v497
      %v870 = vpop.f32.mrf.mxu0
      %v871 = vadd.f32 0.0, %v870
      %v872 = vpop.f32.mrf.mxu0
      %873 = vmatprep.mubr.f32.mxu0 0.0
      %874 = vmatmul.mubr.f32.gmra.mxu0 %v500
      %v875 = vpop.f32.mrf.mxu0
      %v876 = vadd.f32 0.0, %v875
      %v877 = vpop.f32.mrf.mxu0
      %878 = vmatprep.mubr.f32.mxu0 0.0
      %879 = vmatmul.mubr.f32.gmra.mxu0 %v503
      %v880 = vpop.f32.mrf.mxu0
      %v881 = vadd.f32 0.0, %v880
      %v882 = vpop.f32.mrf.mxu0
      %883 = vmatprep.mubr.f32.mxu0 0.0
      %884 = vmatmul.mubr.f32.gmra.mxu0 %v506
      %v885 = vpop.f32.mrf.mxu0
      %v886 = vadd.f32 0.0, %v885
      %v887 = vpop.f32.mrf.mxu0
      %888 = vmatprep.mubr.f32.mxu0 0.0
      %889 = vmatmul.mubr.f32.gmra.mxu0 %v509
      %v890 = vpop.f32.mrf.mxu0
      %v891 = vadd.f32 0.0, %v890
      %v892 = vpop.f32.mrf.mxu0
      %893 = vmatprep.mubr.f32.mxu0 0.0
      %894 = vmatmul.mubr.f32.gmra.mxu0 %v512
      %v895 = vpop.f32.mrf.mxu0
      %v896 = vadd.f32 0.0, %v895
      %v897 = vpop.f32.mrf.mxu0
      %898 = vmatprep.mubr.f32.mxu0 0.0
      %899 = vmatmul.mubr.f32.gmra.mxu0 %v515
      %v900 = vpop.f32.mrf.mxu0
      %v901 = vadd.f32 0.0, %v900
      %v902 = vpop.f32.mrf.mxu0
      %903 = vmatprep.mubr.f32.mxu0 0.0
      %904 = vmatmul.mubr.f32.gmra.mxu0 %v518
      %v905 = vpop.f32.mrf.mxu0
      %v906 = vadd.f32 0.0, %v905
      %v907 = vpop.f32.mrf.mxu0
      %908 = vdwg.mxu0
      %vm909 = vcmask 64512
      %910 = vst.msk [vmem:[%s246] sm:$0xff] %vm909, %v591
      %911 = vst.msk [vmem:[%s246 + $0x8] sm:$0xff] %vm909, %v596
      %912 = vst.msk [vmem:[%s246 + $0x10] sm:$0xff] %vm909, %v601
      %913 = vst.msk [vmem:[%s246 + $0x18] sm:$0xff] %vm909, %v606
      %914 = vst.msk [vmem:[%s246 + $0x20] sm:$0xff] %vm909, %v611
      %915 = vst.msk [vmem:[%s246 + $0x28] sm:$0xff] %vm909, %v616
      %916 = vst.msk [vmem:[%s246 + $0x30] sm:$0xff] %vm909, %v621
      %917 = vst.msk [vmem:[%s246 + $0x38] sm:$0xff] %vm909, %v626
      %918 = vst.msk [vmem:[%s246 + $0x40] sm:$0xff] %vm909, %v631
      %919 = vst.msk [vmem:[%s246 + $0x48] sm:$0xff] %vm909, %v636
      %920 = vst.msk [vmem:[%s246 + $0x50] sm:$0xff] %vm909, %v641
      %921 = vst.msk [vmem:[%s246 + $0x58] sm:$0xff] %vm909, %v646
      %922 = vst.msk [vmem:[%s246 + $0x60] sm:$0xff] %vm909, %v651
      %923 = vst.msk [vmem:[%s246 + $0x68] sm:$0xff] %vm909, %v656
      %924 = vst.msk [vmem:[%s246 + $0x70] sm:$0xff] %vm909, %v661
      %925 = vst.msk [vmem:[%s246 + $0x78] sm:$0xff] %vm909, %v666
      %926 = vst.msk [vmem:[%s246 + $0x80] sm:$0xff] %vm909, %v671
      %927 = vst.msk [vmem:[%s246 + $0x88] sm:$0xff] %vm909, %v676
      %928 = vst.msk [vmem:[%s246 + $0x90] sm:$0xff] %vm909, %v681
      %929 = vst.msk [vmem:[%s246 + $0x98] sm:$0xff] %vm909, %v686
      %930 = vst.msk [vmem:[%s246 + $0xa0] sm:$0xff] %vm909, %v691
      %931 = vst.msk [vmem:[%s246 + $0xa8] sm:$0xff] %vm909, %v696
      %932 = vst.msk [vmem:[%s246 + $0xb0] sm:$0xff] %vm909, %v701
      %933 = vst.msk [vmem:[%s246 + $0xb8] sm:$0xff] %vm909, %v706
      %934 = vst.msk [vmem:[%s246 + $0xc0] sm:$0xff] %vm909, %v711
      %935 = vst.msk [vmem:[%s246 + $0xc8] sm:$0xff] %vm909, %v716
      %936 = vst.msk [vmem:[%s246 + $0xd0] sm:$0xff] %vm909, %v721
      %937 = vst.msk [vmem:[%s246 + $0xd8] sm:$0xff] %vm909, %v726
      %938 = vst.msk [vmem:[%s246 + $0xe0] sm:$0xff] %vm909, %v731
      %939 = vst.msk [vmem:[%s246 + $0xe8] sm:$0xff] %vm909, %v736
      %940 = vst.msk [vmem:[%s246 + $0xf0] sm:$0xff] %vm909, %v741
      %941 = vst.msk [vmem:[%s246 + $0xf8] sm:$0xff] %vm909, %v746
      %942 = vst.msk [vmem:[%s246 + $0x100] sm:$0xff] %vm909, %v751
      %943 = vst.msk [vmem:[%s246 + $0x108] sm:$0xff] %vm909, %v756
      %944 = vst.msk [vmem:[%s246 + $0x110] sm:$0xff] %vm909, %v761
      %945 = vst.msk [vmem:[%s246 + $0x118] sm:$0xff] %vm909, %v766
      %946 = vst.msk [vmem:[%s246 + $0x120] sm:$0xff] %vm909, %v771
      %947 = vst.msk [vmem:[%s246 + $0x128] sm:$0xff] %vm909, %v776
      %948 = vst.msk [vmem:[%s246 + $0x130] sm:$0xff] %vm909, %v781
      %949 = vst.msk [vmem:[%s246 + $0x138] sm:$0xff] %vm909, %v786
      %950 = vst.msk [vmem:[%s246 + $0x140] sm:$0xff] %vm909, %v791
      %951 = vst.msk [vmem:[%s246 + $0x148] sm:$0xff] %vm909, %v796
      %952 = vst.msk [vmem:[%s246 + $0x150] sm:$0xff] %vm909, %v801
      %953 = vst.msk [vmem:[%s246 + $0x158] sm:$0xff] %vm909, %v806
      %954 = vst.msk [vmem:[%s246 + $0x160] sm:$0xff] %vm909, %v811
      %955 = vst.msk [vmem:[%s246 + $0x168] sm:$0xff] %vm909, %v816
      %956 = vst.msk [vmem:[%s246 + $0x170] sm:$0xff] %vm909, %v821
      %957 = vst.msk [vmem:[%s246 + $0x178] sm:$0xff] %vm909, %v826
      %958 = vst.msk [vmem:[%s246 + $0x180] sm:$0xff] %vm909, %v831
      %959 = vst.msk [vmem:[%s246 + $0x188] sm:$0xff] %vm909, %v836
      %960 = vst.msk [vmem:[%s246 + $0x190] sm:$0xff] %vm909, %v841
      %961 = vst.msk [vmem:[%s246 + $0x198] sm:$0xff] %vm909, %v846
      %962 = vst.msk [vmem:[%s246 + $0x1a0] sm:$0xff] %vm909, %v851
      %963 = vst.msk [vmem:[%s246 + $0x1a8] sm:$0xff] %vm909, %v856
      %964 = vst.msk [vmem:[%s246 + $0x1b0] sm:$0xff] %vm909, %v861
      %965 = vst.msk [vmem:[%s246 + $0x1b8] sm:$0xff] %vm909, %v866
      %966 = vst.msk [vmem:[%s246 + $0x1c0] sm:$0xff] %vm909, %v871
      %967 = vst.msk [vmem:[%s246 + $0x1c8] sm:$0xff] %vm909, %v876
      %968 = vst.msk [vmem:[%s246 + $0x1d0] sm:$0xff] %vm909, %v881
      %969 = vst.msk [vmem:[%s246 + $0x1d8] sm:$0xff] %vm909, %v886
      %970 = vst.msk [vmem:[%s246 + $0x1e0] sm:$0xff] %vm909, %v891
      %971 = vst.msk [vmem:[%s246 + $0x1e8] sm:$0xff] %vm909, %v896
      %972 = vst.msk [vmem:[%s246 + $0x1f0] sm:$0xff] %vm909, %v901
      %973 = vst.msk [vmem:[%s246 + $0x1f8] sm:$0xff] %vm909, %v906
      %p974 = scmp.eq.s32.totalorder %s21, 0
      // Predicated region
      $region29: #{deconv_bn_act_2d.2} parent=27 // pred_check
        %p975 = pneg %p974
      $region30: #{deconv_bn_act_2d.2} parent=27 // pred_check_branch
        %977 = sbr.rel (%p975) target = $region32
      $region31: #{deconv_bn_act_2d.2} parent=27 // pred_region
        %978 = vst.msk [vmem:[%s253] sm:$0xff] %vm909, 0.0
        %979 = vst.msk [vmem:[%s257] sm:$0xff] %vm909, 0.0
      $region32: #{deconv_bn_act_2d.2} parent=27 // pred_fallthru
        _
      %v980 = vld [vmem:[%s253] sm:$0xff]
      %v981 = vsel %vm909, %v591, 0.0
      %v982 = vsel %vm909, %v596, 0.0
      %v983 = vadd.f32 %v981, %v982
      %v984 = vsel %vm909, %v601, 0.0
      %v985 = vadd.f32 %v983, %v984
      %v986 = vsel %vm909, %v606, 0.0
      %v987 = vadd.f32 %v985, %v986
      %v988 = vsel %vm909, %v611, 0.0
      %v989 = vadd.f32 %v987, %v988
      %v990 = vsel %vm909, %v616, 0.0
      %v991 = vadd.f32 %v989, %v990
      %v992 = vsel %vm909, %v621, 0.0
      %v993 = vadd.f32 %v991, %v992
      %v994 = vsel %vm909, %v626, 0.0
      %v995 = vadd.f32 %v993, %v994
      %v996 = vsel %vm909, %v631, 0.0
      %v997 = vadd.f32 %v995, %v996
      %v998 = vsel %vm909, %v636, 0.0
      %v999 = vadd.f32 %v997, %v998
      %v1000 = vsel %vm909, %v641, 0.0
      %v1001 = vadd.f32 %v999, %v1000
      %v1002 = vsel %vm909, %v646, 0.0
      %v1003 = vadd.f32 %v1001, %v1002
      %v1004 = vsel %vm909, %v651, 0.0
      %v1005 = vadd.f32 %v1003, %v1004
      %v1006 = vsel %vm909, %v656, 0.0
      %v1007 = vadd.f32 %v1005, %v1006
      %v1008 = vsel %vm909, %v661, 0.0
      %v1009 = vadd.f32 %v1007, %v1008
      %v1010 = vsel %vm909, %v666, 0.0
      %v1011 = vadd.f32 %v1009, %v1010
      %v1012 = vsel %vm909, %v671, 0.0
      %v1013 = vadd.f32 %v1011, %v1012
      %v1014 = vsel %vm909, %v676, 0.0
      %v1015 = vadd.f32 %v1013, %v1014
      %v1016 = vsel %vm909, %v681, 0.0
      %v1017 = vadd.f32 %v1015, %v1016
      %v1018 = vsel %vm909, %v686, 0.0
      %v1019 = vadd.f32 %v1017, %v1018
      %v1020 = vsel %vm909, %v691, 0.0
      %v1021 = vadd.f32 %v1019, %v1020
      %v1022 = vsel %vm909, %v696, 0.0
      %v1023 = vadd.f32 %v1021, %v1022
      %v1024 = vsel %vm909, %v701, 0.0
      %v1025 = vadd.f32 %v1023, %v1024
      %v1026 = vsel %vm909, %v706, 0.0
      %v1027 = vadd.f32 %v1025, %v1026
      %v1028 = vsel %vm909, %v711, 0.0
      %v1029 = vadd.f32 %v1027, %v1028
      %v1030 = vsel %vm909, %v716, 0.0
      %v1031 = vadd.f32 %v1029, %v1030
      %v1032 = vsel %vm909, %v721, 0.0
      %v1033 = vadd.f32 %v1031, %v1032
      %v1034 = vsel %vm909, %v726, 0.0
      %v1035 = vadd.f32 %v1033, %v1034
      %v1036 = vsel %vm909, %v731, 0.0
      %v1037 = vadd.f32 %v1035, %v1036
      %v1038 = vsel %vm909, %v736, 0.0
      %v1039 = vadd.f32 %v1037, %v1038
      %v1040 = vsel %vm909, %v741, 0.0
      %v1041 = vadd.f32 %v1039, %v1040
      %v1042 = vsel %vm909, %v746, 0.0
      %v1043 = vadd.f32 %v1041, %v1042
      %v1044 = vsel %vm909, %v751, 0.0
      %v1045 = vadd.f32 %v1043, %v1044
      %v1046 = vsel %vm909, %v756, 0.0
      %v1047 = vadd.f32 %v1045, %v1046
      %v1048 = vsel %vm909, %v761, 0.0
      %v1049 = vadd.f32 %v1047, %v1048
      %v1050 = vsel %vm909, %v766, 0.0
      %v1051 = vadd.f32 %v1049, %v1050
      %v1052 = vsel %vm909, %v771, 0.0
      %v1053 = vadd.f32 %v1051, %v1052
      %v1054 = vsel %vm909, %v776, 0.0
      %v1055 = vadd.f32 %v1053, %v1054
      %v1056 = vsel %vm909, %v781, 0.0
      %v1057 = vadd.f32 %v1055, %v1056
      %v1058 = vsel %vm909, %v786, 0.0
      %v1059 = vadd.f32 %v1057, %v1058
      %v1060 = vsel %vm909, %v791, 0.0
      %v1061 = vadd.f32 %v1059, %v1060
      %v1062 = vsel %vm909, %v796, 0.0
      %v1063 = vadd.f32 %v1061, %v1062
      %v1064 = vsel %vm909, %v801, 0.0
      %v1065 = vadd.f32 %v1063, %v1064
      %v1066 = vsel %vm909, %v806, 0.0
      %v1067 = vadd.f32 %v1065, %v1066
      %v1068 = vsel %vm909, %v811, 0.0
      %v1069 = vadd.f32 %v1067, %v1068
      %v1070 = vsel %vm909, %v816, 0.0
      %v1071 = vadd.f32 %v1069, %v1070
      %v1072 = vsel %vm909, %v821, 0.0
      %v1073 = vadd.f32 %v1071, %v1072
      %v1074 = vsel %vm909, %v826, 0.0
      %v1075 = vadd.f32 %v1073, %v1074
      %v1076 = vsel %vm909, %v831, 0.0
      %v1077 = vadd.f32 %v1075, %v1076
      %v1078 = vsel %vm909, %v836, 0.0
      %v1079 = vadd.f32 %v1077, %v1078
      %v1080 = vsel %vm909, %v841, 0.0
      %v1081 = vadd.f32 %v1079, %v1080
      %v1082 = vsel %vm909, %v846, 0.0
      %v1083 = vadd.f32 %v1081, %v1082
      %v1084 = vsel %vm909, %v851, 0.0
      %v1085 = vadd.f32 %v1083, %v1084
      %v1086 = vsel %vm909, %v856, 0.0
      %v1087 = vadd.f32 %v1085, %v1086
      %v1088 = vsel %vm909, %v861, 0.0
      %v1089 = vadd.f32 %v1087, %v1088
      %v1090 = vsel %vm909, %v866, 0.0
      %v1091 = vadd.f32 %v1089, %v1090
      %v1092 = vsel %vm909, %v871, 0.0
      %v1093 = vadd.f32 %v1091, %v1092
      %v1094 = vsel %vm909, %v876, 0.0
      %v1095 = vadd.f32 %v1093, %v1094
      %v1096 = vsel %vm909, %v881, 0.0
      %v1097 = vadd.f32 %v1095, %v1096
      %v1098 = vsel %vm909, %v886, 0.0
      %v1099 = vadd.f32 %v1097, %v1098
      %v1100 = vsel %vm909, %v891, 0.0
      %v1101 = vadd.f32 %v1099, %v1100
      %v1102 = vsel %vm909, %v896, 0.0
      %v1103 = vadd.f32 %v1101, %v1102
      %v1104 = vsel %vm909, %v901, 0.0
      %v1105 = vadd.f32 %v1103, %v1104
      %v1106 = vsel %vm909, %v906, 0.0
      %v1107 = vadd.f32 %v1105, %v1106
      %v1108 = vrot.slane %v1107, 4
      %v1109 = vadd.f32 %v1107, %v1108
      %v1110 = vrot.slane %v1109, 2
      %v1111 = vadd.f32 %v1109, %v1110
      %v1112 = vrot.slane %v1111, 1
      %v1113 = vadd.f32 %v1111, %v1112
      %v1114 = vadd.f32 %v980, %v1113
      %1115 = vst.msk [vmem:[%s253] sm:$0xff] %vm909, %v1114
      %v1116 = vld [vmem:[%s257] sm:$0xff]
      %v1117 = vmul.f32 %v591, %v591
      %v1118 = vmul.f32 %v596, %v596
      %v1119 = vmul.f32 %v601, %v601
      %v1120 = vmul.f32 %v606, %v606
      %v1121 = vmul.f32 %v611, %v611
      %v1122 = vmul.f32 %v616, %v616
      %v1123 = vmul.f32 %v621, %v621
      %v1124 = vmul.f32 %v626, %v626
      %v1125 = vmul.f32 %v631, %v631
      %v1126 = vmul.f32 %v636, %v636
      %v1127 = vmul.f32 %v641, %v641
      %v1128 = vmul.f32 %v646, %v646
      %v1129 = vmul.f32 %v651, %v651
      %v1130 = vmul.f32 %v656, %v656
      %v1131 = vmul.f32 %v661, %v661
      %v1132 = vmul.f32 %v666, %v666
      %v1133 = vmul.f32 %v671, %v671
      %v1134 = vmul.f32 %v676, %v676
      %v1135 = vmul.f32 %v681, %v681
      %v1136 = vmul.f32 %v686, %v686
      %v1137 = vmul.f32 %v691, %v691
      %v1138 = vmul.f32 %v696, %v696
      %v1139 = vmul.f32 %v701, %v701
      %v1140 = vmul.f32 %v706, %v706
      %v1141 = vmul.f32 %v711, %v711
      %v1142 = vmul.f32 %v716, %v716
      %v1143 = vmul.f32 %v721, %v721
      %v1144 = vmul.f32 %v726, %v726
      %v1145 = vmul.f32 %v731, %v731
      %v1146 = vmul.f32 %v736, %v736
      %v1147 = vmul.f32 %v741, %v741
      %v1148 = vmul.f32 %v746, %v746
      %v1149 = vmul.f32 %v751, %v751
      %v1150 = vmul.f32 %v756, %v756
      %v1151 = vmul.f32 %v761, %v761
      %v1152 = vmul.f32 %v766, %v766
      %v1153 = vmul.f32 %v771, %v771
      %v1154 = vmul.f32 %v776, %v776
      %v1155 = vmul.f32 %v781, %v781
      %v1156 = vmul.f32 %v786, %v786
      %v1157 = vmul.f32 %v791, %v791
      %v1158 = vmul.f32 %v796, %v796
      %v1159 = vmul.f32 %v801, %v801
      %v1160 = vmul.f32 %v806, %v806
      %v1161 = vmul.f32 %v811, %v811
      %v1162 = vmul.f32 %v816, %v816
      %v1163 = vmul.f32 %v821, %v821
      %v1164 = vmul.f32 %v826, %v826
      %v1165 = vmul.f32 %v831, %v831
      %v1166 = vmul.f32 %v836, %v836
      %v1167 = vmul.f32 %v841, %v841
      %v1168 = vmul.f32 %v846, %v846
      %v1169 = vmul.f32 %v851, %v851
      %v1170 = vmul.f32 %v856, %v856
      %v1171 = vmul.f32 %v861, %v861
      %v1172 = vmul.f32 %v866, %v866
      %v1173 = vmul.f32 %v871, %v871
      %v1174 = vmul.f32 %v876, %v876
      %v1175 = vmul.f32 %v881, %v881
      %v1176 = vmul.f32 %v886, %v886
      %v1177 = vmul.f32 %v891, %v891
      %v1178 = vmul.f32 %v896, %v896
      %v1179 = vmul.f32 %v901, %v901
      %v1180 = vmul.f32 %v906, %v906
      %v1181 = vsel %vm909, %v1117, 0.0
      %v1182 = vsel %vm909, %v1118, 0.0
      %v1183 = vadd.f32 %v1181, %v1182
      %v1184 = vsel %vm909, %v1119, 0.0
      %v1185 = vadd.f32 %v1183, %v1184
      %v1186 = vsel %vm909, %v1120, 0.0
      %v1187 = vadd.f32 %v1185, %v1186
      %v1188 = vsel %vm909, %v1121, 0.0
      %v1189 = vadd.f32 %v1187, %v1188
      %v1190 = vsel %vm909, %v1122, 0.0
      %v1191 = vadd.f32 %v1189, %v1190
      %v1192 = vsel %vm909, %v1123, 0.0
      %v1193 = vadd.f32 %v1191, %v1192
      %v1194 = vsel %vm909, %v1124, 0.0
      %v1195 = vadd.f32 %v1193, %v1194
      %v1196 = vsel %vm909, %v1125, 0.0
      %v1197 = vadd.f32 %v1195, %v1196
      %v1198 = vsel %vm909, %v1126, 0.0
      %v1199 = vadd.f32 %v1197, %v1198
      %v1200 = vsel %vm909, %v1127, 0.0
      %v1201 = vadd.f32 %v1199, %v1200
      %v1202 = vsel %vm909, %v1128, 0.0
      %v1203 = vadd.f32 %v1201, %v1202
      %v1204 = vsel %vm909, %v1129, 0.0
      %v1205 = vadd.f32 %v1203, %v1204
      %v1206 = vsel %vm909, %v1130, 0.0
      %v1207 = vadd.f32 %v1205, %v1206
      %v1208 = vsel %vm909, %v1131, 0.0
      %v1209 = vadd.f32 %v1207, %v1208
      %v1210 = vsel %vm909, %v1132, 0.0
      %v1211 = vadd.f32 %v1209, %v1210
      %v1212 = vsel %vm909, %v1133, 0.0
      %v1213 = vadd.f32 %v1211, %v1212
      %v1214 = vsel %vm909, %v1134, 0.0
      %v1215 = vadd.f32 %v1213, %v1214
      %v1216 = vsel %vm909, %v1135, 0.0
      %v1217 = vadd.f32 %v1215, %v1216
      %v1218 = vsel %vm909, %v1136, 0.0
      %v1219 = vadd.f32 %v1217, %v1218
      %v1220 = vsel %vm909, %v1137, 0.0
      %v1221 = vadd.f32 %v1219, %v1220
      %v1222 = vsel %vm909, %v1138, 0.0
      %v1223 = vadd.f32 %v1221, %v1222
      %v1224 = vsel %vm909, %v1139, 0.0
      %v1225 = vadd.f32 %v1223, %v1224
      %v1226 = vsel %vm909, %v1140, 0.0
      %v1227 = vadd.f32 %v1225, %v1226
      %v1228 = vsel %vm909, %v1141, 0.0
      %v1229 = vadd.f32 %v1227, %v1228
      %v1230 = vsel %vm909, %v1142, 0.0
      %v1231 = vadd.f32 %v1229, %v1230
      %v1232 = vsel %vm909, %v1143, 0.0
      %v1233 = vadd.f32 %v1231, %v1232
      %v1234 = vsel %vm909, %v1144, 0.0
      %v1235 = vadd.f32 %v1233, %v1234
      %v1236 = vsel %vm909, %v1145, 0.0
      %v1237 = vadd.f32 %v1235, %v1236
      %v1238 = vsel %vm909, %v1146, 0.0
      %v1239 = vadd.f32 %v1237, %v1238
      %v1240 = vsel %vm909, %v1147, 0.0
      %v1241 = vadd.f32 %v1239, %v1240
      %v1242 = vsel %vm909, %v1148, 0.0
      %v1243 = vadd.f32 %v1241, %v1242
      %v1244 = vsel %vm909, %v1149, 0.0
      %v1245 = vadd.f32 %v1243, %v1244
      %v1246 = vsel %vm909, %v1150, 0.0
      %v1247 = vadd.f32 %v1245, %v1246
      %v1248 = vsel %vm909, %v1151, 0.0
      %v1249 = vadd.f32 %v1247, %v1248
      %v1250 = vsel %vm909, %v1152, 0.0
      %v1251 = vadd.f32 %v1249, %v1250
      %v1252 = vsel %vm909, %v1153, 0.0
      %v1253 = vadd.f32 %v1251, %v1252
      %v1254 = vsel %vm909, %v1154, 0.0
      %v1255 = vadd.f32 %v1253, %v1254
      %v1256 = vsel %vm909, %v1155, 0.0
      %v1257 = vadd.f32 %v1255, %v1256
      %v1258 = vsel %vm909, %v1156, 0.0
      %v1259 = vadd.f32 %v1257, %v1258
      %v1260 = vsel %vm909, %v1157, 0.0
      %v1261 = vadd.f32 %v1259, %v1260
      %v1262 = vsel %vm909, %v1158, 0.0
      %v1263 = vadd.f32 %v1261, %v1262
      %v1264 = vsel %vm909, %v1159, 0.0
      %v1265 = vadd.f32 %v1263, %v1264
      %v1266 = vsel %vm909, %v1160, 0.0
      %v1267 = vadd.f32 %v1265, %v1266
      %v1268 = vsel %vm909, %v1161, 0.0
      %v1269 = vadd.f32 %v1267, %v1268
      %v1270 = vsel %vm909, %v1162, 0.0
      %v1271 = vadd.f32 %v1269, %v1270
      %v1272 = vsel %vm909, %v1163, 0.0
      %v1273 = vadd.f32 %v1271, %v1272
      %v1274 = vsel %vm909, %v1164, 0.0
      %v1275 = vadd.f32 %v1273, %v1274
      %v1276 = vsel %vm909, %v1165, 0.0
      %v1277 = vadd.f32 %v1275, %v1276
      %v1278 = vsel %vm909, %v1166, 0.0
      %v1279 = vadd.f32 %v1277, %v1278
      %v1280 = vsel %vm909, %v1167, 0.0
      %v1281 = vadd.f32 %v1279, %v1280
      %v1282 = vsel %vm909, %v1168, 0.0
      %v1283 = vadd.f32 %v1281, %v1282
      %v1284 = vsel %vm909, %v1169, 0.0
      %v1285 = vadd.f32 %v1283, %v1284
      %v1286 = vsel %vm909, %v1170, 0.0
      %v1287 = vadd.f32 %v1285, %v1286
      %v1288 = vsel %vm909, %v1171, 0.0
      %v1289 = vadd.f32 %v1287, %v1288
      %v1290 = vsel %vm909, %v1172, 0.0
      %v1291 = vadd.f32 %v1289, %v1290
      %v1292 = vsel %vm909, %v1173, 0.0
      %v1293 = vadd.f32 %v1291, %v1292
      %v1294 = vsel %vm909, %v1174, 0.0
      %v1295 = vadd.f32 %v1293, %v1294
      %v1296 = vsel %vm909, %v1175, 0.0
      %v1297 = vadd.f32 %v1295, %v1296
      %v1298 = vsel %vm909, %v1176, 0.0
      %v1299 = vadd.f32 %v1297, %v1298
      %v1300 = vsel %vm909, %v1177, 0.0
      %v1301 = vadd.f32 %v1299, %v1300
      %v1302 = vsel %vm909, %v1178, 0.0
      %v1303 = vadd.f32 %v1301, %v1302
      %v1304 = vsel %vm909, %v1179, 0.0
      %v1305 = vadd.f32 %v1303, %v1304
      %v1306 = vsel %vm909, %v1180, 0.0
      %v1307 = vadd.f32 %v1305, %v1306
      %v1308 = vrot.slane %v1307, 4
      %v1309 = vadd.f32 %v1307, %v1308
      %v1310 = vrot.slane %v1309, 2
      %v1311 = vadd.f32 %v1309, %v1310
      %v1312 = vrot.slane %v1311, 1
      %v1313 = vadd.f32 %v1311, %v1312
      %v1314 = vadd.f32 %v1116, %v1313
      %1315 = vst.msk [vmem:[%s257] sm:$0xff] %vm909, %v1314
      %s1316 = smul.u32 %s20, 2
      %s1317 = sadd.s32 %s1316, %s21
      %s1318 = smul.u32 64, %s1317
      %p1319 = scmp.lt.s32.totalorder %s1318, 255
      %s1320 = scalar_select %p1319, %s1318, 255
      %s1321 = smul.addr %s1320, 8
      %s1322 = scalar_lea.vmem %s2, %s1321
      %p1323 = scmp.lt.s32.totalorder %s20, 1
      %s1324 = scalar_select %p1323, %s20, 1
      %s1325 = smul.addr %s1324, 8
      %s1326 = scalar_lea.vmem %s3, %s1325
      %p1327 = scmp.lt.s32.totalorder %s20, 1
      %s1328 = scalar_select %p1327, %s20, 1
      %s1329 = smul.addr %s1328, 8
      %s1330 = scalar_lea.vmem %s4, %s1329
      // Predicated region
      $region33: #{deconv_bn_act_2d.2} parent=27 // pred_check
        %p1331 = pneg %p101
      $region34: #{deconv_bn_act_2d.2} parent=27 // pred_check_branch
        %1333 = sbr.rel (%p1331) target = $region36
      $region35: #{deconv_bn_act_2d.2} parent=27 // pred_region
        %s1334 = smul.u32 %s20, 2
        %s1335 = sadd.s32 %s1334, %s21
        %s1336 = smul.u32 64, %s1335
      $region36: #{deconv_bn_act_2d.2} parent=27 // pred_fallthru
        _
      // Predicated region
      $region37: #{deconv_bn_act_2d.2} parent=27 // pred_check
        %p1337 = pneg %p127
      $region38: #{deconv_bn_act_2d.2} parent=27 // pred_check_branch
        %1339 = sbr.rel (%p1337) target = $region40
      $region39: #{deconv_bn_act_2d.2} parent=27 // pred_region
        _
      $region40: #{deconv_bn_act_2d.2} parent=27 // pred_fallthru
        _
      // Predicated region
      $region41: #{deconv_bn_act_2d.2} parent=27 // pred_check
        %p1340 = pneg %p153
      $region42: #{deconv_bn_act_2d.2} parent=27 // pred_check_branch
        %1342 = sbr.rel (%p1340) target = $region44
      $region43: #{deconv_bn_act_2d.2} parent=27 // pred_region
        _
      $region44: #{deconv_bn_act_2d.2} parent=27 // pred_fallthru
        _
    $region28: #{deconv_bn_act_2d.2} parent=5 // pred_fallthru
      _
    %p1343 = scmp.le.s32.totalorder 2, %s11
    // Predicated region
    $region45: #{deconv_bn_act_2d.2} parent=5 // pred_check
      %p1344 = pneg %p1343
    $region46: #{deconv_bn_act_2d.2} parent=5 // pred_check_branch
      %1346 = sbr.rel (%p1344) target = $region48
    $region47: #{deconv_bn_act_2d.2} parent=5 // pred_region
      %s1347 = ssub.s32 %s11, 2
      // Predicated region
      $region49: #{deconv_bn_act_2d.2} parent=47 // pred_check
        %p1348 = pneg %p107
      $region50: #{deconv_bn_act_2d.2} parent=47 // pred_check_branch
        %1350 = sbr.rel (%p1348) target = $region52
      $region51: #{deconv_bn_act_2d.2} parent=47 // pred_region
        %s1351 = smul.u32 %s22, 2
        %s1352 = sadd.s32 %s1351, %s23
        %s1353 = smul.u32 64, %s1352
        %p1354 = scmp.lt.s32.totalorder %s1353, 255
        %s1355 = scalar_select %p1354, %s1353, 255
        %s1356 = smul.addr %s1355, 8
        %s1357 = scalar_lea.vmem %s2, %s1356
      $region52: #{deconv_bn_act_2d.2} parent=47 // pred_fallthru
        _
      // Predicated region
      $region53: #{deconv_bn_act_2d.2} parent=47 // pred_check
        %p1358 = pneg %p133
      $region54: #{deconv_bn_act_2d.2} parent=47 // pred_check_branch
        %1360 = sbr.rel (%p1358) target = $region56
      $region55: #{deconv_bn_act_2d.2} parent=47 // pred_region
        %p1361 = scmp.lt.s32.totalorder %s22, 1
        %s1362 = scalar_select %p1361, %s22, 1
        %s1363 = smul.addr %s1362, 8
        %s1364 = scalar_lea.vmem %s3, %s1363
      $region56: #{deconv_bn_act_2d.2} parent=47 // pred_fallthru
        _
      // Predicated region
      $region57: #{deconv_bn_act_2d.2} parent=47 // pred_check
        %p1365 = pneg %p159
      $region58: #{deconv_bn_act_2d.2} parent=47 // pred_check_branch
        %1367 = sbr.rel (%p1365) target = $region60
      $region59: #{deconv_bn_act_2d.2} parent=47 // pred_region
        %p1368 = scmp.lt.s32.totalorder %s22, 1
        %s1369 = scalar_select %p1368, %s22, 1
        %s1370 = smul.addr %s1369, 8
        %s1371 = scalar_lea.vmem %s4, %s1370
      $region60: #{deconv_bn_act_2d.2} parent=47 // pred_fallthru
        _
    $region48: #{deconv_bn_act_2d.2} parent=5 // pred_fallthru
      _
  $region6: #{deconv_bn_act_2d.2} parent=0 // loop_footer
    %s15 = sadd.s32 1, %s11
  $region7: #{deconv_bn_act_2d.2} parent=0 // loop_footer_branch
    %10 = sbr.rel target = $region3
  $region8: #{deconv_bn_act_2d.2} parent=0 // loop_exit
    _

// kernel: deconv_bn_act_2d.3
$region0: #{deconv_bn_act_2d.3}
  #allocation0 [shape = 'u32[]', space=smem, size = 0x4, offset = 0x4, fixed_abs, tag = 'smem constant byte address 0x4 - core index']
  #allocation1 [shape = 'u32[144,128]{1,0:T(1,128)}', space=vmem, size = 0x12000, scoped, tag = 'internal scratch']
  %s0 = inlined_call_operand.vmem [shape: f32[128,128], index: 0, kind: input, shape index: {}, may-alias: {0,3}]
  %s1 = inlined_call_operand.vmem [shape: f32[1,128], index: 1, kind: input, shape index: {}]
  %s2 = inlined_call_operand.vmem [shape: f32[1,128], index: 2, kind: input, shape index: {}]
  %s3 = inlined_call_operand.vmem [shape: f32[128,128], index: 3, kind: output, shape index: {}, may-alias: {0,3}]
  %s4 = sld [smem:[#allocation0]]
  $region45: #{deconv_bn_act_2d.3} parent=0
    _
  %s6 = ssub.s32 1, %s4
  %s7 = scalar_select 0, %s6, %s4
  loop: start=0, step=1, limit=6
  $region2: #{deconv_bn_act_2d.3} parent=0 // loop_pre_header
    _
  $region3: #{deconv_bn_act_2d.3} parent=0 // loop_header
    %s9 = sphi 0, %s13
    %p10 = scmp.ge.s32.totalorder %s9, 6
    %s19 = sphi 0, %s21
    %s22 = sphi 0, %s19
    %s23 = sphi 0, %s22
    %s39 = sphi 0, %s23
    %s43 = sphi 0, %s43
    %s45 = sphi 0, %s43
    %s46 = sphi 0, %s45
    %s60 = sphi 0, %s46
    %s64 = sphi 0, %s64
    %s66 = sphi 0, %s64
    %s67 = sphi 0, %s66
    %s81 = sphi 0, %s67
    %s87 = sphi 0, %s89
    %s90 = sphi 0, %s87
    %s91 = sphi 0, %s90
    %s107 = sphi 0, %s91
  $region4: #{deconv_bn_act_2d.3} parent=0 // loop_header_branch
    %12 = sbr.rel (%p10) target = $region8
  $region5: #{deconv_bn_act_2d.3} parent=0 // loop_body
    %s14 = ssub.s32 %s9, 1
    %s15 = ssub.s32 %s9, 2
    %s16 = sadd.s32 %s9, 1
    %s17 = ssub.s32 %s9, %s16
    %p18 = scmp.eq.s32.totalorder %s17, 0
    %s20 = sadd.s32 %s19, 1
    %s21 = scalar_select %p18, %s19, %s20
    %p24 = pneg %p18
    %p25 = scmp.eq.s32.totalorder %s9, 3
    %p26 = por %p24, %p25
    %p27 = scmp.ne.s32.totalorder %s19, %s22
    %p28 = scmp.eq.s32.totalorder %s9, 0
    %p29 = por %p27, %p28
    %p30 = scmp.ne.s32.totalorder %s19, %s22
    %p31 = scmp.eq.s32.totalorder %s14, 3
    %p32 = por %p30, %p31
    %p33 = scmp.ne.s32.totalorder %s22, %s23
    %p34 = scmp.eq.s32.totalorder %s14, 0
    %p35 = por %p33, %p34
    %p36 = scmp.ne.s32.totalorder %s22, %s23
    %p37 = scmp.eq.s32.totalorder %s15, 3
    %p38 = por %p36, %p37
    %p40 = scmp.ne.s32.totalorder %s23, %s39
    %p41 = scmp.eq.s32.totalorder %s15, 0
    %p42 = por %p40, %p41
    %s44 = sadd.s32 %s43, 1
    %p47 = scmp.eq.s32.totalorder %s9, 3
    %p48 = scmp.ne.s32.totalorder %s43, %s45
    %p49 = scmp.eq.s32.totalorder %s9, 0
    %p50 = por %p48, %p49
    %p51 = scmp.ne.s32.totalorder %s43, %s45
    %p52 = scmp.eq.s32.totalorder %s14, 3
    %p53 = por %p51, %p52
    %p54 = scmp.ne.s32.totalorder %s45, %s46
    %p55 = scmp.eq.s32.totalorder %s14, 0
    %p56 = por %p54, %p55
    %p57 = scmp.ne.s32.totalorder %s45, %s46
    %p58 = scmp.eq.s32.totalorder %s15, 3
    %p59 = por %p57, %p58
    %p61 = scmp.ne.s32.totalorder %s46, %s60
    %p62 = scmp.eq.s32.totalorder %s15, 0
    %p63 = por %p61, %p62
    %s65 = sadd.s32 %s64, 1
    %p68 = scmp.eq.s32.totalorder %s9, 3
    %p69 = scmp.ne.s32.totalorder %s64, %s66
    %p70 = scmp.eq.s32.totalorder %s9, 0
    %p71 = por %p69, %p70
    %p72 = scmp.ne.s32.totalorder %s64, %s66
    %p73 = scmp.eq.s32.totalorder %s14, 3
    %p74 = por %p72, %p73
    %p75 = scmp.ne.s32.totalorder %s66, %s67
    %p76 = scmp.eq.s32.totalorder %s14, 0
    %p77 = por %p75, %p76
    %p78 = scmp.ne.s32.totalorder %s66, %s67
    %p79 = scmp.eq.s32.totalorder %s15, 3
    %p80 = por %p78, %p79
    %p82 = scmp.ne.s32.totalorder %s67, %s81
    %p83 = scmp.eq.s32.totalorder %s15, 0
    %p84 = por %p82, %p83
    %s85 = ssub.s32 %s9, %s16
    %p86 = scmp.eq.s32.totalorder %s85, 0
    %s88 = sadd.s32 %s87, 1
    %s89 = scalar_select %p86, %s87, %s88
    %p92 = pneg %p86
    %p93 = scmp.eq.s32.totalorder %s9, 3
    %p94 = por %p92, %p93
    %p95 = scmp.ne.s32.totalorder %s87, %s90
    %p96 = scmp.eq.s32.totalorder %s9, 0
    %p97 = por %p95, %p96
    %p98 = scmp.ne.s32.totalorder %s87, %s90
    %p99 = scmp.eq.s32.totalorder %s14, 3
    %p100 = por %p98, %p99
    %p101 = scmp.ne.s32.totalorder %s90, %s91
    %p102 = scmp.eq.s32.totalorder %s14, 0
    %p103 = por %p101, %p102
    %p104 = scmp.ne.s32.totalorder %s90, %s91
    %p105 = scmp.eq.s32.totalorder %s15, 3
    %p106 = por %p104, %p105
    %p108 = scmp.ne.s32.totalorder %s91, %s107
    %p109 = scmp.eq.s32.totalorder %s15, 0
    %p110 = por %p108, %p109
    %p111 = scmp.le.s32.totalorder 1, %s9
    %p112 = scmp.lt.s32.totalorder %s9, 5
    %p113 = pnand %p111, %p112
    %p114 = pneg %p113
    // Predicated region
    $region9: #{deconv_bn_act_2d.3} parent=5 // pred_check
      _
    $region10: #{deconv_bn_act_2d.3} parent=5 // pred_check_branch
      %116 = sbr.rel (%p113) target = $region12
    $region11: #{deconv_bn_act_2d.3} parent=5 // pred_region
      %s117 = ssub.s32 %s9, 1
      // Predicated region
      $region13: #{deconv_bn_act_2d.3} parent=11 // pred_check
        %p118 = pneg %p56
      $region14: #{deconv_bn_act_2d.3} parent=11 // pred_check_branch
        %120 = sbr.rel (%p118) target = $region16
      $region15: #{deconv_bn_act_2d.3} parent=11 // pred_region
        _
      $region16: #{deconv_bn_act_2d.3} parent=11 // pred_fallthru
        _
      // Predicated region
      $region17: #{deconv_bn_act_2d.3} parent=11 // pred_check
        %p121 = pneg %p77
      $region18: #{deconv_bn_act_2d.3} parent=11 // pred_check_branch
        %123 = sbr.rel (%p121) target = $region20
      $region19: #{deconv_bn_act_2d.3} parent=11 // pred_region
        _
      $region20: #{deconv_bn_act_2d.3} parent=11 // pred_fallthru
        _
    $region12: #{deconv_bn_act_2d.3} parent=5 // pred_fallthru
      _
    %p124 = scmp.lt.s32.totalorder %s9, 4
    // Predicated region
    $region21: #{deconv_bn_act_2d.3} parent=5 // pred_check
      %p125 = pneg %p124
    $region22: #{deconv_bn_act_2d.3} parent=5 // pred_check_branch
      %127 = sbr.rel (%p125) target = $region24
    $region23: #{deconv_bn_act_2d.3} parent=5 // pred_region
      // Predicated region
      $region25: #{deconv_bn_act_2d.3} parent=23 // pred_check
        %p128 = pneg %p29
      $region26: #{deconv_bn_act_2d.3} parent=23 // pred_check_branch
        %130 = sbr.rel (%p128) target = $region28
      $region27: #{deconv_bn_act_2d.3} parent=23 // pred_region
        %s131 = smul.u32 4, %s9
        %p132 = scmp.lt.s32.totalorder %s131, 15
        %s133 = scalar_select %p132, %s131, 15
        %s134 = smul.addr %s133, 8
        %s135 = scalar_lea.vmem %s0, %s134
        %s136 = smul.u32 4, %s9
      $region28: #{deconv_bn_act_2d.3} parent=23 // pred_fallthru
        _
    $region24: #{deconv_bn_act_2d.3} parent=5 // pred_fallthru
      _
    %p137 = scmp.le.s32.totalorder 1, %s9
    %p138 = scmp.lt.s32.totalorder %s9, 5
    %p139 = pnand %p137, %p138
    %p140 = pneg %p139
    // Predicated region
    $region29: #{deconv_bn_act_2d.3} parent=5 // pred_check
      _
    $region30: #{deconv_bn_act_2d.3} parent=5 // pred_check_branch
      %142 = sbr.rel (%p139) target = $region32
    $region31: #{deconv_bn_act_2d.3} parent=5 // pred_region
      %s143 = ssub.s32 %s9, 1
      %s144 = smul.u32 4, %s14
      %p145 = scmp.lt.s32.totalorder %s144, 15
      %s146 = scalar_select %p145, %s144, 15
      %s147 = smul.addr %s146, 8
      %s148 = scalar_lea.vmem %s0, %s147
      %p149 = pneg %p35
      %p150 = pneg %p32
      %p151 = pneg %p56
      %p152 = pneg %p53
      %p153 = pneg %p77
      %p154 = pneg %p74
      %p155 = pneg %p103
      %p156 = pneg %p100
      %s157 = smul.u32 4, %s14
      %p158 = scmp.lt.s32.totalorder %s157, 15
      %s159 = scalar_select %p158, %s157, 15
      %s160 = smul.addr %s159, 8
      %s161 = scalar_lea.vmem %s3, %s160
      %s162 = smul.u32 4, %s14
      %p163 = scmp.lt.s32.totalorder %s162, 15
      %s164 = scalar_select %p163, %s162, 15
      %s165 = smul.addr %s164, 8
      %s166 = scalar_lea.vmem %s0, %s165
      %s167 = smul.u32 4, %s14
      %s168 = smul.u32 4, %s14
      %p169 = scmp.lt.s32.totalorder %s168, 15
      %s170 = scalar_select %p169, %s168, 15
      %s171 = smul.addr %s170, 8
      %s172 = scalar_lea.vmem %s3, %s171
      %s173 = smul.u32 4, %s14
      %v174 = vld [vmem:[%s166] sm:$0xff]
      %v175 = vld [vmem:[%s166 + $0x8] sm:$0xff]
      %v176 = vld [vmem:[%s166 + $0x10] sm:$0xff]
      %v177 = vld [vmem:[%s166 + $0x18] sm:$0xff]
      %v178 = vld [vmem:[%s1] sm:$0x1]
      %v180 = vlaneseq
      %v181 = vshrl.u32 %v180, 7
      %v182 = vsub.s32 0, %v181
      %v183 = vrot.slane %v178, %v182
      %v185 = vmul.f32 %v174, %v183
      %v186 = vmul.f32 %v175, %v183
      %v187 = vmul.f32 %v176, %v183
      %v188 = vmul.f32 %v177, %v183
      %v189 = vld [vmem:[%s2] sm:$0x1]
      %v191 = vlaneseq
      %v192 = vshrl.u32 %v191, 7
      %v193 = vsub.s32 0, %v192
      %v194 = vrot.slane %v189, %v193
      %v196 = vadd.f32 %v185, %v194
      %v197 = vadd.f32 %v186, %v194
      %v198 = vadd.f32 %v187, %v194
      %v199 = vadd.f32 %v188, %v194
      %v200 = vmax.f32 %v196, 0.0
      %v201 = vmax.f32 %v197, 0.0
      %v202 = vmax.f32 %v198, 0.0
      %v203 = vmax.f32 %v199, 0.0
      %204 = vst [vmem:[%s172] sm:$0xff] %v200
      %205 = vst [vmem:[%s172 + $0x8] sm:$0xff] %v201
      %206 = vst [vmem:[%s172 + $0x10] sm:$0xff] %v202
      %207 = vst [vmem:[%s172 + $0x18] sm:$0xff] %v203
      %s208 = smul.u32 4, %s14
      %p209 = scmp.lt.s32.totalorder %s208, 15
      %s210 = scalar_select %p209, %s208, 15
      %s211 = smul.addr %s210, 8
      %s212 = scalar_lea.vmem %s3, %s211
      // Predicated region
      $region33: #{deconv_bn_act_2d.3} parent=31 // pred_check
        %p213 = pneg %p100
      $region34: #{deconv_bn_act_2d.3} parent=31 // pred_check_branch
        %215 = sbr.rel (%p213) target = $region36
      $region35: #{deconv_bn_act_2d.3} parent=31 // pred_region
        %s216 = smul.u32 4, %s14
      $region36: #{deconv_bn_act_2d.3} parent=31 // pred_fallthru
        _
    $region32: #{deconv_bn_act_2d.3} parent=5 // pred_fallthru
      _
    %p217 = scmp.le.s32.totalorder 2, %s9
    // Predicated region
    $region37: #{deconv_bn_act_2d.3} parent=5 // pred_check
      %p218 = pneg %p217
    $region38: #{deconv_bn_act_2d.3} parent=5 // pred_check_branch
      %220 = sbr.rel (%p218) target = $region40
    $region39: #{deconv_bn_act_2d.3} parent=5 // pred_region
      %s221 = ssub.s32 %s9, 2
      // Predicated region
      $region41: #{deconv_bn_act_2d.3} parent=39 // pred_check
        %p222 = pneg %p106
      $region42: #{deconv_bn_act_2d.3} parent=39 // pred_check_branch
        %224 = sbr.rel (%p222) target = $region44
      $region43: #{deconv_bn_act_2d.3} parent=39 // pred_region
        %s225 = smul.u32 4, %s15
        %p226 = scmp.lt.s32.totalorder %s225, 15
        %s227 = scalar_select %p226, %s225, 15
        %s228 = smul.addr %s227, 8
        %s229 = scalar_lea.vmem %s3, %s228
      $region44: #{deconv_bn_act_2d.3} parent=39 // pred_fallthru
        _
    $region40: #{deconv_bn_act_2d.3} parent=5 // pred_fallthru
      _
  $region6: #{deconv_bn_act_2d.3} parent=0 // loop_footer
    %s13 = sadd.s32 1, %s9
  $region7: #{deconv_bn_act_2d.3} parent=0 // loop_footer_branch
    %8 = sbr.rel target = $region3
  $region8: #{deconv_bn_act_2d.3} parent=0 // loop_exit
    _

</llo_original>
